<compile_context>
chip_gen: v6e
topology: v6e:2x2x1
jax: 0.10.0
libtpu: 0.0.40
codegen_flags: <defaults>
</compile_context>

<pallas_src>
import jax
import jax.numpy as jnp
from jax import lax
from jax.experimental import pallas as pl
from jax.experimental.pallas import tpu as pltpu
import numpy as np


# ----------------------------------------------------------------------------
# Host-side operator construction (static: depends only on sizes and sigma)
# ----------------------------------------------------------------------------
def _gaussian_1d(kernel_size: int, sigma: float) -> np.ndarray:
    """kornia-style normalized 1D Gaussian taps (float64)."""
    x = np.arange(kernel_size, dtype=np.float64) - kernel_size // 2
    if kernel_size % 2 == 0:
        x = x + 0.5
    g = np.exp(-(x ** 2) / (2.0 * float(sigma) ** 2))
    return g / g.sum()


def _fused_operator(out_size: int, in_size: int, sigma: float) -> np.ndarray:
    """(out_size, in_size) matrix L s.t. L @ v == blur(reflect_pad(nearest_upsample(v)))."""
    S, n = int(out_size), int(in_size)
    K = 2 * int(4.0 * sigma + 0.5) + 1
    pad = (K - 1) // 2
    if pad >= S:
        raise ValueError(
            f"reflect padding needs input_size > {pad} for sigma={sigma}; got {S}")
    g = _gaussian_1d(K, sigma)                                # (K,) float64

    up_idx = (np.arange(S) * n) // S                          # PyTorch 'nearest' source idx
    p = np.arange(S + 2 * pad) - pad                          # reflect ("same") pad source idx
    refl = np.where(p < 0, -p, p)
    refl = np.where(refl >= S, 2 * (S - 1) - refl, refl)
    src = up_idx[refl]                                        # (S + 2*pad,) -> index into [0, n)

    L = np.zeros((S, n), dtype=np.float64)
    for i in range(S):
        np.add.at(L[i], src[i:i + K], g)                      # accumulate taps per source column
    return L.astype(np.float32)


# ----------------------------------------------------------------------------
# Pallas kernel: two MXU calls per grid step (batched, lane-dense)
# ----------------------------------------------------------------------------
def _anomaly_map_kernel(lr_ref, lct_ref, x_ref, out_ref):
    """
    lr_ref : VMEM (ts, h)      fused row operator (rows of this output tile)
    lct_ref: VMEM (w, S)       fused column operator, transposed (lane-dense minor dim S)
    x_ref  : VMEM (bt, h, w)   raw patch scores for this batch tile
    out_ref: VMEM (bt, ts, S)
    """
    bt, h, w = x_ref.shape
    ts = lr_ref.shape[0]
    S = lct_ref.shape[1]

    # 1) Column operator for the whole batch tile in one lane-dense MXU call:
    #    (bt*h, w) @ (w, S) -> (bt, h, S).  h is sublane-aligned so the reshape is free.
    y = lax.dot_general(
        x_ref[...].reshape(bt * h, w), lct_ref[...],
        dimension_numbers=(((1,), (0,)), ((), ())),
        preferred_element_type=jnp.float32,
        precision=lax.Precision.HIGHEST,
    ).reshape(bt, h, S)

    # 2) Row operator as one batched MXU contraction: (bt, ts, h) x (bt, h, S) -> (bt, ts, S).
    lr_b = jnp.broadcast_to(lr_ref[...], (bt, ts, h))
    out_ref[...] = lax.dot_general(
        lr_b, y,
        dimension_numbers=(((2,), (1,)), ((0,), (0,))),
        preferred_element_type=jnp.float32,
        precision=lax.Precision.HIGHEST,
    )


# ----------------------------------------------------------------------------
# Tiling selection (no batch padding; generation-aware row split)
# ----------------------------------------------------------------------------
def _choose_tiling(B: int, S: int, h: int, w: int,
                   max_batch_tile: int = 16,
                   vmem_budget_bytes: int = 12 << 20):
    # Largest divisor of B <= max_batch_tile whose double-buffered in/out blocks fit
    # comfortably under the smallest default scoped-VMEM limit (16 MiB on v5e).
    bt = 1
    for d in range(1, min(B, max_batch_tile) + 1):
        if B % d:
            continue
        need = 2 * d * (S * S + h * w) * 4          # worst case ts == S
        if need <= vmem_budget_bytes:
            bt = d
    n_bt = B // bt

    # Dual-TensorCore chips (v7x) want >=2 steps per core; single-TC chips only need
    # >=3 total steps so output writeback of step i hides under compute of step i+1.
    try:
        kind = jax.devices()[0].device_kind.lower()
    except Exception:
        kind = ""
    dual_tc = "7" in kind
    target_steps = 4 if dual_tc else 3

    n_rt = 1
    while (n_bt * n_rt < target_steps and n_rt < 4
           and S % (2 * n_rt) == 0 and (S // (2 * n_rt)) % 8 == 0):
        n_rt *= 2
    return bt, n_rt, S // n_rt


# ----------------------------------------------------------------------------
# Wrapper
# ----------------------------------------------------------------------------
def anomaly_map_generator(patch_scores: jnp.ndarray,
                          input_size: int = 224,
                          sigma: int = 4,
                          max_batch_tile: int = 16) -> jnp.ndarray:
    """Pallas equivalent of AnomalyMapGenerator.forward.

    patch_scores: (B, 1, h, w) float32, NCHW.
    Returns:      (B, 1, input_size, input_size) float32.
    """
    B, C, h, w = patch_scores.shape
    assert C == 1, "AnomalyMapGenerator blur is configured for channels=1"
    S = int(input_size)
    x = patch_scores.astype(jnp.float32).reshape(B, h, w)

    # Fused linear operators: out[b] = Lr @ x[b] @ Lc^T  (upsample + reflect pad + blur).
    lr = jnp.asarray(_fused_operator(S, h, sigma))                         # (S, h)
    lct = jnp.asarray(np.ascontiguousarray(_fused_operator(S, w, sigma).T))  # (w, S)

    bt, n_rt, ts = _choose_tiling(B, S, h, w, max_batch_tile)

    # TODO(synk): on v5e a bf16 output would halve the store-bound HBM writeback, but it
    # changes the module's f32 output dtype, so it is not applied here.
    out = pl.pallas_call(
        _anomaly_map_kernel,
        out_shape=jax.ShapeDtypeStruct((B, S, S), jnp.float32),
        grid_spec=pltpu.PrefetchScalarGridSpec(
            num_scalar_prefetch=0,
            grid=(B // bt, n_rt),
            in_specs=[
                pl.BlockSpec((ts, h), lambda b, r: (r, 0)),          # row operator tile
                pl.BlockSpec((w, S), lambda b, r: (0, 0)),           # column operator (shared)
                pl.BlockSpec((bt, h, w), lambda b, r: (b, 0, 0)),    # raw patch scores
            ],
            out_specs=pl.BlockSpec((bt, ts, S), lambda b, r: (b, r, 0)),
        ),
        compiler_params=pltpu.CompilerParams(
            dimension_semantics=("parallel", "parallel")),
    )(lr, lct, x)

    return out.reshape(B, 1, S, S)


# ----------------------------------------------------------------------------
# Pure-numpy float64 reference mirroring the PyTorch module step by step
# ----------------------------------------------------------------------------
def _reference_numpy(patch_scores: np.ndarray, input_size: int, sigma: float) -> np.ndarray:
    B, C, h, w = patch_scores.shape
    S = int(input_size)
    K = 2 * int(4.0 * sigma + 0.5) + 1
    pad = (K - 1) // 2
    g = _gaussian_1d(K, sigma)

    x = patch_scores.astype(np.float64)[:, 0]                 # (B, h, w)
    ridx = (np.arange(S) * h) // S
    cidx = (np.arange(S) * w) // S
    up = x[:, ridx][:, :, cidx]                               # nearest upsample (B, S, S)
    xp = np.pad(up, ((0, 0), (pad, pad), (pad, pad)), mode="reflect")

    tmp = np.zeros((B, S, S + 2 * pad), dtype=np.float64)
    for k in range(K):                                        # vertical taps
        tmp += g[k] * xp[:, k:k + S, :]
    out = np.zeros((B, S, S), dtype=np.float64)
    for k in range(K):                                        # horizontal taps
        out += g[k] * tmp[:, :, k:k + S]
    return out[:, None, :, :].astype(np.float32)


if __name__ == "__main__":
    key = jax.random.PRNGKey(0)
    B, C, h, w = 2, 1, 16, 16
    INPUT_SIZE = 64      # small spatial size for the demo (module default is 224)
    SIGMA = 4            # module default -> kernel_size = 33, pad = 16

    patch_scores = jax.random.uniform(key, (B, C, h, w), dtype=jnp.float32)

    anomaly_map = anomaly_map_generator(patch_scores, input_size=INPUT_SIZE, sigma=SIGMA)
    anomaly_map = jax.block_until_ready(anomaly_map)

    expected = _reference_numpy(np.asarray(patch_scores), INPUT_SIZE, SIGMA)
    np.testing.assert_allclose(np.asarray(anomaly_map), expected, rtol=1e-4, atol=1e-5)
    assert anomaly_map.shape == (B, 1, INPUT_SIZE, INPUT_SIZE)

    print("KERNEL_OK")
</pallas_src>

<mosaic_0001>
module attributes {stable_mosaic.version = 11 : i64} {
  func.func @_anomaly_map_kernel(%arg0: i32, %arg1: i32, %arg2: memref<16x16xf32, #tpu.memory_space<vmem>>, %arg3: memref<16x64xf32, #tpu.memory_space<vmem>>, %arg4: memref<2x16x16xf32, #tpu.memory_space<vmem>>, %arg5: memref<2x16x64xf32, #tpu.memory_space<vmem>>) attributes {dimension_semantics = [#tpu.dimension_semantics<parallel>, #tpu.dimension_semantics<parallel>], iteration_bounds = array<i64: 1, 4>, scalar_prefetch = 0 : i64, scratch_operands = 0 : i64, tpu.core_type = #tpu.core_type<tc>, window_params = [{transform_indices = @transform_0, window_bounds = array<i64: 16, 16>}, {pipeline_mode = #tpu.pipeline_mode<synchronous>, transform_indices = @transform_1, window_bounds = array<i64: 16, 64>}, {transform_indices = @transform_2, window_bounds = array<i64: 2, 16, 16>}, {transform_indices = @transform_3, window_bounds = array<i64: 2, 16, 64>}]} {
    %c0 = arith.constant 0 : index
    %c0_0 = arith.constant 0 : index
    %c0_1 = arith.constant 0 : index
    %0 = vector.load %arg4[%c0, %c0_0, %c0_1] : memref<2x16x16xf32, #tpu.memory_space<vmem>>, vector<2x16x16xf32>
    %1 = vector.shape_cast %0 : vector<2x16x16xf32> to vector<32x16xf32>
    %c0_2 = arith.constant 0 : index
    %c0_3 = arith.constant 0 : index
    %2 = vector.load %arg3[%c0_2, %c0_3] : memref<16x64xf32, #tpu.memory_space<vmem>>, vector<16x64xf32>
    %cst = arith.constant dense<0.000000e+00> : vector<32x64xf32>
    %3 = tpu.matmul %1, %2, %cst {dimension_numbers = #tpu.dot_dimension_numbers<[1], [0], [0], [1], [0, 0, 1, 1], [], []>, precision = #tpu.contract_precision<fp32>} : vector<32x16xf32>, vector<16x64xf32>, vector<32x64xf32> -> vector<32x64xf32>
    %4 = vector.shape_cast %3 : vector<32x64xf32> to vector<2x16x64xf32>
    %c0_4 = arith.constant 0 : index
    %c0_5 = arith.constant 0 : index
    %5 = vector.load %arg2[%c0_4, %c0_5] : memref<16x16xf32, #tpu.memory_space<vmem>>, vector<16x16xf32>
    %6 = vector.shape_cast %5 : vector<16x16xf32> to vector<1x16x16xf32>
    %7 = vector.broadcast %6 : vector<1x16x16xf32> to vector<2x16x16xf32>
    %cst_6 = arith.constant dense<0.000000e+00> : vector<2x16x64xf32>
    %8 = tpu.matmul %7, %4, %cst_6 {dimension_numbers = #tpu.dot_dimension_numbers<[2], [1], [1], [2], [0, 0, 0, 1, 1, 2], [0], [0]>, precision = #tpu.contract_precision<fp32>} : vector<2x16x16xf32>, vector<2x16x64xf32>, vector<2x16x64xf32> -> vector<2x16x64xf32>
    %c0_7 = arith.constant 0 : index
    %c0_8 = arith.constant 0 : index
    %c0_9 = arith.constant 0 : index
    %9 = vector.load %arg5[%c0_7, %c0_8, %c0_9] : memref<2x16x64xf32, #tpu.memory_space<vmem>>, vector<2x16x64xf32>
    tpu.vector_store %arg5[%c0_7, %c0_8, %c0_9], %8 {strides = array<i32>} : memref<2x16x64xf32, #tpu.memory_space<vmem>>, vector<2x16x64xf32>,
    return
  }
  func.func @transform_0(%arg0: i32, %arg1: i32) -> (i32, i32) {
    %c0_i32 = arith.constant 0 : i32
    %c0_i32_0 = arith.constant 0 : i32
    return %arg1, %c0_i32 : i32, i32
  }
  func.func @transform_1(%arg0: i32, %arg1: i32) -> (i32, i32) {
    %c0_i32 = arith.constant 0 : i32
    %c0_i32_0 = arith.constant 0 : i32
    %c0_i32_1 = arith.constant 0 : i32
    return %c0_i32, %c0_i32_0 : i32, i32
  }
  func.func @transform_2(%arg0: i32, %arg1: i32) -> (i32, i32, i32) {
    %c0_i32 = arith.constant 0 : i32
    %c0_i32_0 = arith.constant 0 : i32
    %c0_i32_1 = arith.constant 0 : i32
    return %arg0, %c0_i32, %c0_i32_0 : i32, i32, i32
  }
  func.func @transform_3(%arg0: i32, %arg1: i32) -> (i32, i32, i32) {
    %c0_i32 = arith.constant 0 : i32
    %c0_i32_0 = arith.constant 0 : i32
    return %arg0, %arg1, %c0_i32 : i32, i32, i32
  }
}

</mosaic_0001>

<llo_original>
// kernel: tpu_custom_call.1
$region0: #{tpu_custom_call.1}
  #allocation0 [shape = 'u32[]', space=smem, size = 0x4, offset = 0x4, fixed_abs, tag = 'smem constant byte address 0x4 - core index']
  #allocation1 [shape = 'u32[144,128]{1,0:T(1,128)}', space=vmem, size = 0x12000, scoped, tag = 'internal scratch']
  #allocation4 [shape = 's32[]', space=sflag, size = 0x4, offset = 0, fixed_abs, tag = 'sflag constant byte address 0x0 - dummy sync flag']
  %s0 = inlined_call_operand.vmem [shape: f32[64,16], index: 0, kind: input, shape index: {}]
  %s1 = inlined_call_operand.vmem [shape: f32[16,64], index: 1, kind: input, shape index: {}]
  %s2 = inlined_call_operand.vmem [shape: f32[2,16,16], index: 2, kind: input, shape index: {}]
  %s3 = inlined_call_operand.hbm [shape: f32[2,64,64], index: 3, kind: output, shape index: {}]
  %s4 = sld [smem:[#allocation0]]
  $region45: #{tpu_custom_call.1} parent=0
    _
  %s6 = ssub.s32 1, %s4
  %s7 = scalar_select 0, %s6, %s4
  $region1: #{tpu_custom_call.1} parent=0
    #allocation2 [shape = 'u8[32768]{0}', space=vmem, size = 0x8000, scoped, tag = 'output window, operand 0']
    #allocation3 [shape = 's32[2]{0}', space=sflag, size = 0x8, scoped, tag = 'scoped memory for tpu_custom_call.1']
    %8 = vsyncpa [#allocation3], 0
    %s9 = scalar_lea.sflag [#allocation3], 1
    %10 = vsyncpa %s9, 0
    loop: start=0, step=1, limit=6
    $region2: #{tpu_custom_call.1} parent=1 // loop_pre_header
      _
    $region3: #{tpu_custom_call.1} parent=1 // loop_header
      %s12 = sphi 0, %s16
      %p13 = scmp.ge.s32.totalorder %s12, 6
      %s19 = sphi 0, %s31
      %s20 = sphi 0, %s27
      %s21 = sphi 0, %s19
      %s22 = sphi 0, %s20
      %s23 = sphi 0, %s21
      %s24 = sphi 0, %s22
      %s34 = sphi 0, %s36
      %s37 = sphi 0, %s34
      %s38 = sphi 0, %s37
      %s54 = sphi 0, %s38
      %s58 = sphi 0, %s58
      %s60 = sphi 0, %s58
      %s61 = sphi 0, %s60
      %s75 = sphi 0, %s61
      %s81 = sphi 0, %s83
      %s84 = sphi 0, %s81
      %s85 = sphi 0, %s84
      %s101 = sphi 0, %s85
      %s109 = sphi 0, %s111
      %s112 = sphi 0, %s109
      %s113 = sphi 0, %s112
      %s129 = sphi 0, %s113
    $region4: #{tpu_custom_call.1} parent=1 // loop_header_branch
      %15 = sbr.rel (%p13) target = $region8
    $region5: #{tpu_custom_call.1} parent=1 // loop_body
      %s17 = ssub.s32 %s12, 1
      %s18 = ssub.s32 %s12, 2
      %s25 = sadd.s32 1, %s20
      %p26 = scmp.ge.s32.totalorder %s25, 4
      %s27 = scalar_select %p26, 0, %s25
      %s28 = sadd.s32 1, %s19
      %s29 = scalar_select %p26, %s28, %s19
      %p30 = scmp.ge.s32.totalorder %s29, 1
      %s31 = scalar_select %p30, 0, %s29
      %s32 = ssub.s32 %s20, %s27
      %p33 = scmp.eq.s32.totalorder %s32, 0
      %s35 = sadd.s32 %s34, 1
      %s36 = scalar_select %p33, %s34, %s35
      %p39 = pneg %p33
      %p40 = scmp.eq.s32.totalorder %s12, 3
      %p41 = por %p39, %p40
      %p42 = scmp.ne.s32.totalorder %s34, %s37
      %p43 = scmp.eq.s32.totalorder %s12, 0
      %p44 = por %p42, %p43
      %p45 = scmp.ne.s32.totalorder %s34, %s37
      %p46 = scmp.eq.s32.totalorder %s17, 3
      %p47 = por %p45, %p46
      %p48 = scmp.ne.s32.totalorder %s37, %s38
      %p49 = scmp.eq.s32.totalorder %s17, 0
      %p50 = por %p48, %p49
      %p51 = scmp.ne.s32.totalorder %s37, %s38
      %p52 = scmp.eq.s32.totalorder %s18, 3
      %p53 = por %p51, %p52
      %p55 = scmp.ne.s32.totalorder %s38, %s54
      %p56 = scmp.eq.s32.totalorder %s18, 0
      %p57 = por %p55, %p56
      %s59 = sadd.s32 %s58, 1
      %p62 = scmp.eq.s32.totalorder %s12, 3
      %p63 = scmp.ne.s32.totalorder %s58, %s60
      %p64 = scmp.eq.s32.totalorder %s12, 0
      %p65 = por %p63, %p64
      %p66 = scmp.ne.s32.totalorder %s58, %s60
      %p67 = scmp.eq.s32.totalorder %s17, 3
      %p68 = por %p66, %p67
      %p69 = scmp.ne.s32.totalorder %s60, %s61
      %p70 = scmp.eq.s32.totalorder %s17, 0
      %p71 = por %p69, %p70
      %p72 = scmp.ne.s32.totalorder %s60, %s61
      %p73 = scmp.eq.s32.totalorder %s18, 3
      %p74 = por %p72, %p73
      %p76 = scmp.ne.s32.totalorder %s61, %s75
      %p77 = scmp.eq.s32.totalorder %s18, 0
      %p78 = por %p76, %p77
      %s79 = ssub.s32 %s19, %s31
      %p80 = scmp.eq.s32.totalorder %s79, 0
      %s82 = sadd.s32 %s81, 1
      %s83 = scalar_select %p80, %s81, %s82
      %p86 = pneg %p80
      %p87 = scmp.eq.s32.totalorder %s12, 3
      %p88 = por %p86, %p87
      %p89 = scmp.ne.s32.totalorder %s81, %s84
      %p90 = scmp.eq.s32.totalorder %s12, 0
      %p91 = por %p89, %p90
      %p92 = scmp.ne.s32.totalorder %s81, %s84
      %p93 = scmp.eq.s32.totalorder %s17, 3
      %p94 = por %p92, %p93
      %p95 = scmp.ne.s32.totalorder %s84, %s85
      %p96 = scmp.eq.s32.totalorder %s17, 0
      %p97 = por %p95, %p96
      %p98 = scmp.ne.s32.totalorder %s84, %s85
      %p99 = scmp.eq.s32.totalorder %s18, 3
      %p100 = por %p98, %p99
      %p102 = scmp.ne.s32.totalorder %s85, %s101
      %p103 = scmp.eq.s32.totalorder %s18, 0
      %p104 = por %p102, %p103
      %s105 = ssub.s32 %s19, %s31
      %s106 = ssub.s32 %s20, %s27
      %s107 = sor.u32 %s105, %s106
      %p108 = scmp.eq.s32.totalorder %s107, 0
      %s110 = sadd.s32 %s109, 1
      %s111 = scalar_select %p108, %s109, %s110
      %p114 = pneg %p108
      %p115 = scmp.eq.s32.totalorder %s12, 3
      %p116 = por %p114, %p115
      %p117 = scmp.ne.s32.totalorder %s109, %s112
      %p118 = scmp.eq.s32.totalorder %s12, 0
      %p119 = por %p117, %p118
      %p120 = scmp.ne.s32.totalorder %s109, %s112
      %p121 = scmp.eq.s32.totalorder %s17, 3
      %p122 = por %p120, %p121
      %p123 = scmp.ne.s32.totalorder %s112, %s113
      %p124 = scmp.eq.s32.totalorder %s17, 0
      %p125 = por %p123, %p124
      %p126 = scmp.ne.s32.totalorder %s112, %s113
      %p127 = scmp.eq.s32.totalorder %s18, 3
      %p128 = por %p126, %p127
      %p130 = scmp.ne.s32.totalorder %s113, %s129
      %p131 = scmp.eq.s32.totalorder %s18, 0
      %p132 = por %p130, %p131
      %p133 = scmp.le.s32.totalorder 1, %s12
      %p134 = scmp.lt.s32.totalorder %s12, 5
      %p135 = pnand %p133, %p134
      %p136 = pneg %p135
      // Predicated region
      $region9: #{tpu_custom_call.1} parent=5 // pred_check
        _
      $region10: #{tpu_custom_call.1} parent=5 // pred_check_branch
        %138 = sbr.rel (%p135) target = $region12
      $region11: #{tpu_custom_call.1} parent=5 // pred_region
        %s139 = ssub.s32 %s12, 1
        // Predicated region
        $region13: #{tpu_custom_call.1} parent=11 // pred_check
          %p140 = pneg %p71
        $region14: #{tpu_custom_call.1} parent=11 // pred_check_branch
          %142 = sbr.rel (%p140) target = $region16
        $region15: #{tpu_custom_call.1} parent=11 // pred_region
          _
        $region16: #{tpu_custom_call.1} parent=11 // pred_fallthru
          _
        // Predicated region
        $region17: #{tpu_custom_call.1} parent=11 // pred_check
          %p143 = pneg %p97
        $region18: #{tpu_custom_call.1} parent=11 // pred_check_branch
          %145 = sbr.rel (%p143) target = $region20
        $region19: #{tpu_custom_call.1} parent=11 // pred_region
          %s146 = smul.u32 2, %s21
          %p147 = scmp.lt.s32.totalorder %s146, 1
          %s148 = scalar_select %p147, %s146, 1
          %s149 = smul.addr %s148, 2
          %s150 = smul.addr %s149, 8
          %s151 = scalar_lea.vmem %s2, %s150
          %s152 = smul.u32 2, %s21
        $region20: #{tpu_custom_call.1} parent=11 // pred_fallthru
          _
      $region12: #{tpu_custom_call.1} parent=5 // pred_fallthru
        _
      %p153 = scmp.lt.s32.totalorder %s12, 4
      // Predicated region
      $region21: #{tpu_custom_call.1} parent=5 // pred_check
        %p154 = pneg %p153
      $region22: #{tpu_custom_call.1} parent=5 // pred_check_branch
        %156 = sbr.rel (%p154) target = $region24
      $region23: #{tpu_custom_call.1} parent=5 // pred_region
        // Predicated region
        $region25: #{tpu_custom_call.1} parent=23 // pred_check
          %p157 = pneg %p44
        $region26: #{tpu_custom_call.1} parent=23 // pred_check_branch
          %159 = sbr.rel (%p157) target = $region28
        $region27: #{tpu_custom_call.1} parent=23 // pred_region
          %s160 = smul.u32 2, %s20
          %p161 = scmp.lt.s32.totalorder %s160, 7
          %s162 = scalar_select %p161, %s160, 7
          %s163 = smul.addr %s162, 8
          %s164 = scalar_lea.vmem %s0, %s163
          %s165 = smul.u32 2, %s20
        $region28: #{tpu_custom_call.1} parent=23 // pred_fallthru
          _
      $region24: #{tpu_custom_call.1} parent=5 // pred_fallthru
        _
      %p166 = scmp.le.s32.totalorder 1, %s12
      %p167 = scmp.lt.s32.totalorder %s12, 5
      %p168 = pnand %p166, %p167
      %p169 = pneg %p168
      // Predicated region
      $region29: #{tpu_custom_call.1} parent=5 // pred_check
        _
      $region30: #{tpu_custom_call.1} parent=5 // pred_check_branch
        %171 = sbr.rel (%p168) target = $region32
      $region31: #{tpu_custom_call.1} parent=5 // pred_region
        %s172 = ssub.s32 %s12, 1
        %s173 = smul.u32 2, %s22
        %p174 = scmp.lt.s32.totalorder %s173, 7
        %s175 = scalar_select %p174, %s173, 7
        %s176 = smul.addr %s175, 8
        %s177 = scalar_lea.vmem %s0, %s176
        %p178 = pneg %p50
        %p179 = pneg %p47
        %p180 = pneg %p71
        %p181 = pneg %p68
        %s182 = smul.u32 2, %s21
        %p183 = scmp.lt.s32.totalorder %s182, 1
        %s184 = scalar_select %p183, %s182, 1
        %s185 = smul.addr %s184, 2
        %s186 = smul.addr %s185, 8
        %s187 = scalar_lea.vmem %s2, %s186
        %p188 = pneg %p97
        %p189 = pneg %p94
        %p190 = pneg %p125
        %p191 = pneg %p122
        %s192 = sand.u32 %s112, 1
        %s193 = scalar_lea.sflag [#allocation3], %s192
        %s194 = sand.u32 %s112, 1
        %s195 = smul.addr %s194, 32
        %s196 = scalar_lea.vmem [#allocation2], %s195
        %s197 = smul.u32 2, %s22
        %p198 = scmp.lt.s32.totalorder %s197, 7
        %s199 = scalar_select %p198, %s197, 7
        %s200 = smul.addr %s199, 8
        %s201 = scalar_lea.vmem %s0, %s200
        %s202 = smul.u32 2, %s22
        %s203 = smul.u32 2, %s21
        %p204 = scmp.lt.s32.totalorder %s203, 1
        %s205 = scalar_select %p204, %s203, 1
        %s206 = smul.addr %s205, 2
        %s207 = smul.addr %s206, 8
        %s208 = scalar_lea.vmem %s2, %s207
        %s209 = smul.u32 2, %s21
        %s210 = smul.u32 2, %s21
        %s211 = smul.u32 2, %s22
        %v212 = vld [vmem:[%s208] sm:$0xff]
        %v213 = vld [vmem:[%s208 + $0x8] sm:$0xff]
        %v214 = vld [vmem:[%s208 + $0x10] sm:$0xff]
        %v215 = vld [vmem:[%s208 + $0x18] sm:$0xff]
        %v216 = vld [vmem:[%s1] sm:$0xff]
        %v217 = vld [vmem:[%s1 + $0x8] sm:$0xff]
        %vm218 = vcmask 130048
        %v220 = vsel %vm218, %v212, 0
        %v223 = vsel %vm218, %v213, 0
        %v226 = vsel %vm218, %v214, 0
        %v229 = vsel %vm218, %v215, 0
        %231 = vmatprep.subr.mxu0 0.0
        %232 = vmatpush1.msra.mxu0 0.0
        %233 = vmatprep.subr.mxu0 0.0
        %234 = vmatpush1.msra.mxu0 0.0
        %235 = vmatprep.subr.mxu0 0.0
        %236 = vmatpush1.msra.mxu0 0.0
        %237 = vmatprep.subr.mxu0 0.0
        %238 = vmatpush1.msra.mxu0 0.0
        %239 = vmatprep.subr.mxu0 0.0
        %240 = vmatpush1.msra.mxu0 0.0
        %241 = vmatprep.subr.mxu0 0.0
        %242 = vmatpush1.msra.mxu0 0.0
        %243 = vmatprep.subr.mxu0 0.0
        %244 = vmatpush1.msra.mxu0 0.0
        %245 = vmatprep.subr.mxu0 0.0
        %246 = vmatpush1.msra.mxu0 0.0
        %247 = vmatprep.subr.mxu0 0.0
        %248 = vmatpush1.msra.mxu0 0.0
        %249 = vmatprep.subr.mxu0 0.0
        %250 = vmatpush1.msra.mxu0 0.0
        %251 = vmatprep.subr.mxu0 0.0
        %252 = vmatpush1.msra.mxu0 0.0
        %253 = vmatprep.subr.mxu0 0.0
        %254 = vmatpush1.msra.mxu0 0.0
        %255 = vmatprep.subr.mxu0 0.0
        %256 = vmatpush1.msra.mxu0 0.0
        %257 = vmatprep.subr.mxu0 0.0
        %258 = vmatpush1.msra.mxu0 0.0
        %259 = vmatprep.subr.mxu0 0.0
        %v260 = vand.u32 %v217, 4294901760
        %261 = vmatpush1.msra.mxu0 %v260
        %262 = vmatprep.subr.mxu0 0.0
        %v263 = vand.u32 %v216, 4294901760
        %264 = vmatpush1.msra.mxu0 %v263
        %265 = vmatprep.subr.mxu0 0.0
        %266 = vmatpush2.msra.mxu0 0.0
        %267 = vmatprep.subr.mxu0 0.0
        %268 = vmatpush2.msra.mxu0 0.0
        %269 = vmatprep.subr.mxu0 0.0
        %270 = vmatpush2.msra.mxu0 0.0
        %271 = vmatprep.subr.mxu0 0.0
        %272 = vmatpush2.msra.mxu0 0.0
        %273 = vmatprep.subr.mxu0 0.0
        %274 = vmatpush2.msra.mxu0 0.0
        %275 = vmatprep.subr.mxu0 0.0
        %276 = vmatpush2.msra.mxu0 0.0
        %277 = vmatprep.subr.mxu0 0.0
        %278 = vmatpush2.msra.mxu0 0.0
        %279 = vmatprep.subr.mxu0 0.0
        %280 = vmatpush2.msra.mxu0 0.0
        %281 = vmatprep.subr.mxu0 0.0
        %282 = vmatpush2.msra.mxu0 0.0
        %283 = vmatprep.subr.mxu0 0.0
        %284 = vmatpush2.msra.mxu0 0.0
        %285 = vmatprep.subr.mxu0 0.0
        %286 = vmatpush2.msra.mxu0 0.0
        %287 = vmatprep.subr.mxu0 0.0
        %288 = vmatpush2.msra.mxu0 0.0
        %289 = vmatprep.subr.mxu0 0.0
        %290 = vmatpush2.msra.mxu0 0.0
        %291 = vmatprep.subr.mxu0 0.0
        %292 = vmatpush2.msra.mxu0 0.0
        %293 = vmatprep.subr.mxu0 0.0
        %294 = vmatpush2.msra.mxu0 0.0
        %295 = vmatprep.subr.mxu0 0.0
        %296 = vmatpush2.msra.mxu0 0.0
        %297 = vmatprep.mubr.f32.mxu0 0.0
        %v298 = vand.u32 %v220, 4294901760
        %v299 = vsub.f32 %v220, %v298
        %v300 = vand.u32 %v299, 4294901760
        %v301 = vsub.f32 %v299, %v300
        %v302 = vand.u32 %v301, 4294901760
        %303 = vmatmul.mubr.f32.gmra.mxu0 %v302
        %v304 = vpop.f32.mrf.mxu0
        %v305 = vadd.f32 0.0, %v304
        %v306 = vpop.f32.mrf.mxu0
        %307 = vmatprep.mubr.f32.mxu0 0.0
        %v308 = vand.u32 %v223, 4294901760
        %v309 = vsub.f32 %v223, %v308
        %v310 = vand.u32 %v309, 4294901760
        %v311 = vsub.f32 %v309, %v310
        %v312 = vand.u32 %v311, 4294901760
        %313 = vmatmul.mubr.f32.gmra.mxu0 %v312
        %v314 = vpop.f32.mrf.mxu0
        %v315 = vadd.f32 0.0, %v314
        %v316 = vpop.f32.mrf.mxu0
        %317 = vmatprep.mubr.f32.mxu0 0.0
        %v318 = vand.u32 %v226, 4294901760
        %v319 = vsub.f32 %v226, %v318
        %v320 = vand.u32 %v319, 4294901760
        %v321 = vsub.f32 %v319, %v320
        %v322 = vand.u32 %v321, 4294901760
        %323 = vmatmul.mubr.f32.gmra.mxu0 %v322
        %v324 = vpop.f32.mrf.mxu0
        %v325 = vadd.f32 0.0, %v324
        %v326 = vpop.f32.mrf.mxu0
        %327 = vmatprep.mubr.f32.mxu0 0.0
        %v328 = vand.u32 %v229, 4294901760
        %v329 = vsub.f32 %v229, %v328
        %v330 = vand.u32 %v329, 4294901760
        %v331 = vsub.f32 %v329, %v330
        %v332 = vand.u32 %v331, 4294901760
        %333 = vmatmul.mubr.f32.gmra.mxu0 %v332
        %v334 = vpop.f32.mrf.mxu0
        %v335 = vadd.f32 0.0, %v334
        %v336 = vpop.f32.mrf.mxu0
        %337 = vdwg.mxu0
        %338 = vmatprep.subr.mxu0 0.0
        %339 = vmatpush1.msra.mxu0 0.0
        %340 = vmatprep.subr.mxu0 0.0
        %341 = vmatpush1.msra.mxu0 0.0
        %342 = vmatprep.subr.mxu0 0.0
        %343 = vmatpush1.msra.mxu0 0.0
        %344 = vmatprep.subr.mxu0 0.0
        %345 = vmatpush1.msra.mxu0 0.0
        %346 = vmatprep.subr.mxu0 0.0
        %347 = vmatpush1.msra.mxu0 0.0
        %348 = vmatprep.subr.mxu0 0.0
        %349 = vmatpush1.msra.mxu0 0.0
        %350 = vmatprep.subr.mxu0 0.0
        %351 = vmatpush1.msra.mxu0 0.0
        %352 = vmatprep.subr.mxu0 0.0
        %353 = vmatpush1.msra.mxu0 0.0
        %354 = vmatprep.subr.mxu0 0.0
        %355 = vmatpush1.msra.mxu0 0.0
        %356 = vmatprep.subr.mxu0 0.0
        %357 = vmatpush1.msra.mxu0 0.0
        %358 = vmatprep.subr.mxu0 0.0
        %359 = vmatpush1.msra.mxu0 0.0
        %360 = vmatprep.subr.mxu0 0.0
        %361 = vmatpush1.msra.mxu0 0.0
        %362 = vmatprep.subr.mxu0 0.0
        %363 = vmatpush1.msra.mxu0 0.0
        %364 = vmatprep.subr.mxu0 0.0
        %365 = vmatpush1.msra.mxu0 0.0
        %366 = vmatprep.subr.mxu0 0.0
        %v367 = vand.u32 %v217, 4294901760
        %v368 = vsub.f32 %v217, %v367
        %v369 = vand.u32 %v368, 4294901760
        %v370 = vsub.f32 %v368, %v369
        %v371 = vand.u32 %v370, 4294901760
        %372 = vmatpush1.msra.mxu0 %v371
        %373 = vmatprep.subr.mxu0 0.0
        %v374 = vand.u32 %v216, 4294901760
        %v375 = vsub.f32 %v216, %v374
        %v376 = vand.u32 %v375, 4294901760
        %v377 = vsub.f32 %v375, %v376
        %v378 = vand.u32 %v377, 4294901760
        %379 = vmatpush1.msra.mxu0 %v378
        %380 = vmatprep.subr.mxu0 0.0
        %381 = vmatpush2.msra.mxu0 0.0
        %382 = vmatprep.subr.mxu0 0.0
        %383 = vmatpush2.msra.mxu0 0.0
        %384 = vmatprep.subr.mxu0 0.0
        %385 = vmatpush2.msra.mxu0 0.0
        %386 = vmatprep.subr.mxu0 0.0
        %387 = vmatpush2.msra.mxu0 0.0
        %388 = vmatprep.subr.mxu0 0.0
        %389 = vmatpush2.msra.mxu0 0.0
        %390 = vmatprep.subr.mxu0 0.0
        %391 = vmatpush2.msra.mxu0 0.0
        %392 = vmatprep.subr.mxu0 0.0
        %393 = vmatpush2.msra.mxu0 0.0
        %394 = vmatprep.subr.mxu0 0.0
        %395 = vmatpush2.msra.mxu0 0.0
        %396 = vmatprep.subr.mxu0 0.0
        %397 = vmatpush2.msra.mxu0 0.0
        %398 = vmatprep.subr.mxu0 0.0
        %399 = vmatpush2.msra.mxu0 0.0
        %400 = vmatprep.subr.mxu0 0.0
        %401 = vmatpush2.msra.mxu0 0.0
        %402 = vmatprep.subr.mxu0 0.0
        %403 = vmatpush2.msra.mxu0 0.0
        %404 = vmatprep.subr.mxu0 0.0
        %405 = vmatpush2.msra.mxu0 0.0
        %406 = vmatprep.subr.mxu0 0.0
        %407 = vmatpush2.msra.mxu0 0.0
        %408 = vmatprep.subr.mxu0 0.0
        %409 = vmatpush2.msra.mxu0 0.0
        %410 = vmatprep.subr.mxu0 0.0
        %411 = vmatpush2.msra.mxu0 0.0
        %412 = vmatprep.mubr.f32.mxu0 0.0
        %v413 = vand.u32 %v220, 4294901760
        %414 = vmatmul.mubr.f32.gmra.mxu0 %v413
        %v415 = vpop.f32.mrf.mxu0
        %v416 = vadd.f32 %v305, %v415
        %v417 = vpop.f32.mrf.mxu0
        %418 = vmatprep.mubr.f32.mxu0 0.0
        %v419 = vand.u32 %v223, 4294901760
        %420 = vmatmul.mubr.f32.gmra.mxu0 %v419
        %v421 = vpop.f32.mrf.mxu0
        %v422 = vadd.f32 %v315, %v421
        %v423 = vpop.f32.mrf.mxu0
        %424 = vmatprep.mubr.f32.mxu0 0.0
        %v425 = vand.u32 %v226, 4294901760
        %426 = vmatmul.mubr.f32.gmra.mxu0 %v425
        %v427 = vpop.f32.mrf.mxu0
        %v428 = vadd.f32 %v325, %v427
        %v429 = vpop.f32.mrf.mxu0
        %430 = vmatprep.mubr.f32.mxu0 0.0
        %v431 = vand.u32 %v229, 4294901760
        %432 = vmatmul.mubr.f32.gmra.mxu0 %v431
        %v433 = vpop.f32.mrf.mxu0
        %v434 = vadd.f32 %v335, %v433
        %v435 = vpop.f32.mrf.mxu0
        %436 = vdwg.mxu0
        %437 = vmatprep.subr.mxu0 0.0
        %438 = vmatpush1.msra.mxu0 0.0
        %439 = vmatprep.subr.mxu0 0.0
        %440 = vmatpush1.msra.mxu0 0.0
        %441 = vmatprep.subr.mxu0 0.0
        %442 = vmatpush1.msra.mxu0 0.0
        %443 = vmatprep.subr.mxu0 0.0
        %444 = vmatpush1.msra.mxu0 0.0
        %445 = vmatprep.subr.mxu0 0.0
        %446 = vmatpush1.msra.mxu0 0.0
        %447 = vmatprep.subr.mxu0 0.0
        %448 = vmatpush1.msra.mxu0 0.0
        %449 = vmatprep.subr.mxu0 0.0
        %450 = vmatpush1.msra.mxu0 0.0
        %451 = vmatprep.subr.mxu0 0.0
        %452 = vmatpush1.msra.mxu0 0.0
        %453 = vmatprep.subr.mxu0 0.0
        %454 = vmatpush1.msra.mxu0 0.0
        %455 = vmatprep.subr.mxu0 0.0
        %456 = vmatpush1.msra.mxu0 0.0
        %457 = vmatprep.subr.mxu0 0.0
        %458 = vmatpush1.msra.mxu0 0.0
        %459 = vmatprep.subr.mxu0 0.0
        %460 = vmatpush1.msra.mxu0 0.0
        %461 = vmatprep.subr.mxu0 0.0
        %462 = vmatpush1.msra.mxu0 0.0
        %463 = vmatprep.subr.mxu0 0.0
        %464 = vmatpush1.msra.mxu0 0.0
        %465 = vmatprep.subr.mxu0 0.0
        %v466 = vand.u32 %v217, 4294901760
        %v467 = vsub.f32 %v217, %v466
        %468 = vmatpush1.msra.mxu0 %v467
        %469 = vmatprep.subr.mxu0 0.0
        %v470 = vand.u32 %v216, 4294901760
        %v471 = vsub.f32 %v216, %v470
        %472 = vmatpush1.msra.mxu0 %v471
        %473 = vmatprep.subr.mxu0 0.0
        %474 = vmatpush2.msra.mxu0 0.0
        %475 = vmatprep.subr.mxu0 0.0
        %476 = vmatpush2.msra.mxu0 0.0
        %477 = vmatprep.subr.mxu0 0.0
        %478 = vmatpush2.msra.mxu0 0.0
        %479 = vmatprep.subr.mxu0 0.0
        %480 = vmatpush2.msra.mxu0 0.0
        %481 = vmatprep.subr.mxu0 0.0
        %482 = vmatpush2.msra.mxu0 0.0
        %483 = vmatprep.subr.mxu0 0.0
        %484 = vmatpush2.msra.mxu0 0.0
        %485 = vmatprep.subr.mxu0 0.0
        %486 = vmatpush2.msra.mxu0 0.0
        %487 = vmatprep.subr.mxu0 0.0
        %488 = vmatpush2.msra.mxu0 0.0
        %489 = vmatprep.subr.mxu0 0.0
        %490 = vmatpush2.msra.mxu0 0.0
        %491 = vmatprep.subr.mxu0 0.0
        %492 = vmatpush2.msra.mxu0 0.0
        %493 = vmatprep.subr.mxu0 0.0
        %494 = vmatpush2.msra.mxu0 0.0
        %495 = vmatprep.subr.mxu0 0.0
        %496 = vmatpush2.msra.mxu0 0.0
        %497 = vmatprep.subr.mxu0 0.0
        %498 = vmatpush2.msra.mxu0 0.0
        %499 = vmatprep.subr.mxu0 0.0
        %500 = vmatpush2.msra.mxu0 0.0
        %501 = vmatprep.subr.mxu0 0.0
        %502 = vmatpush2.msra.mxu0 0.0
        %503 = vmatprep.subr.mxu0 0.0
        %504 = vmatpush2.msra.mxu0 0.0
        %505 = vmatprep.mubr.f32.mxu0 0.0
        %v506 = vand.u32 %v220, 4294901760
        %v507 = vsub.f32 %v220, %v506
        %508 = vmatmul.mubr.f32.gmra.mxu0 %v507
        %v509 = vpop.f32.mrf.mxu0
        %v510 = vadd.f32 %v416, %v509
        %v511 = vpop.f32.mrf.mxu0
        %512 = vmatprep.mubr.f32.mxu0 0.0
        %v513 = vand.u32 %v223, 4294901760
        %v514 = vsub.f32 %v223, %v513
        %515 = vmatmul.mubr.f32.gmra.mxu0 %v514
        %v516 = vpop.f32.mrf.mxu0
        %v517 = vadd.f32 %v422, %v516
        %v518 = vpop.f32.mrf.mxu0
        %519 = vmatprep.mubr.f32.mxu0 0.0
        %v520 = vand.u32 %v226, 4294901760
        %v521 = vsub.f32 %v226, %v520
        %522 = vmatmul.mubr.f32.gmra.mxu0 %v521
        %v523 = vpop.f32.mrf.mxu0
        %v524 = vadd.f32 %v428, %v523
        %v525 = vpop.f32.mrf.mxu0
        %526 = vmatprep.mubr.f32.mxu0 0.0
        %v527 = vand.u32 %v229, 4294901760
        %v528 = vsub.f32 %v229, %v527
        %529 = vmatmul.mubr.f32.gmra.mxu0 %v528
        %v530 = vpop.f32.mrf.mxu0
        %v531 = vadd.f32 %v434, %v530
        %v532 = vpop.f32.mrf.mxu0
        %533 = vdwg.mxu0
        %534 = vmatprep.subr.mxu0 0.0
        %535 = vmatpush1.msra.mxu0 0.0
        %536 = vmatprep.subr.mxu0 0.0
        %537 = vmatpush1.msra.mxu0 0.0
        %538 = vmatprep.subr.mxu0 0.0
        %539 = vmatpush1.msra.mxu0 0.0
        %540 = vmatprep.subr.mxu0 0.0
        %541 = vmatpush1.msra.mxu0 0.0
        %542 = vmatprep.subr.mxu0 0.0
        %543 = vmatpush1.msra.mxu0 0.0
        %544 = vmatprep.subr.mxu0 0.0
        %545 = vmatpush1.msra.mxu0 0.0
        %546 = vmatprep.subr.mxu0 0.0
        %547 = vmatpush1.msra.mxu0 0.0
        %548 = vmatprep.subr.mxu0 0.0
        %549 = vmatpush1.msra.mxu0 0.0
        %550 = vmatprep.subr.mxu0 0.0
        %551 = vmatpush1.msra.mxu0 0.0
        %552 = vmatprep.subr.mxu0 0.0
        %553 = vmatpush1.msra.mxu0 0.0
        %554 = vmatprep.subr.mxu0 0.0
        %555 = vmatpush1.msra.mxu0 0.0
        %556 = vmatprep.subr.mxu0 0.0
        %557 = vmatpush1.msra.mxu0 0.0
        %558 = vmatprep.subr.mxu0 0.0
        %559 = vmatpush1.msra.mxu0 0.0
        %560 = vmatprep.subr.mxu0 0.0
        %561 = vmatpush1.msra.mxu0 0.0
        %562 = vmatprep.subr.mxu0 0.0
        %v563 = vand.u32 %v217, 4294901760
        %564 = vmatpush1.msra.mxu0 %v563
        %565 = vmatprep.subr.mxu0 0.0
        %v566 = vand.u32 %v216, 4294901760
        %567 = vmatpush1.msra.mxu0 %v566
        %568 = vmatprep.subr.mxu0 0.0
        %569 = vmatpush2.msra.mxu0 0.0
        %570 = vmatprep.subr.mxu0 0.0
        %571 = vmatpush2.msra.mxu0 0.0
        %572 = vmatprep.subr.mxu0 0.0
        %573 = vmatpush2.msra.mxu0 0.0
        %574 = vmatprep.subr.mxu0 0.0
        %575 = vmatpush2.msra.mxu0 0.0
        %576 = vmatprep.subr.mxu0 0.0
        %577 = vmatpush2.msra.mxu0 0.0
        %578 = vmatprep.subr.mxu0 0.0
        %579 = vmatpush2.msra.mxu0 0.0
        %580 = vmatprep.subr.mxu0 0.0
        %581 = vmatpush2.msra.mxu0 0.0
        %582 = vmatprep.subr.mxu0 0.0
        %583 = vmatpush2.msra.mxu0 0.0
        %584 = vmatprep.subr.mxu0 0.0
        %585 = vmatpush2.msra.mxu0 0.0
        %586 = vmatprep.subr.mxu0 0.0
        %587 = vmatpush2.msra.mxu0 0.0
        %588 = vmatprep.subr.mxu0 0.0
        %589 = vmatpush2.msra.mxu0 0.0
        %590 = vmatprep.subr.mxu0 0.0
        %591 = vmatpush2.msra.mxu0 0.0
        %592 = vmatprep.subr.mxu0 0.0
        %593 = vmatpush2.msra.mxu0 0.0
        %594 = vmatprep.subr.mxu0 0.0
        %595 = vmatpush2.msra.mxu0 0.0
        %596 = vmatprep.subr.mxu0 0.0
        %597 = vmatpush2.msra.mxu0 0.0
        %598 = vmatprep.subr.mxu0 0.0
        %599 = vmatpush2.msra.mxu0 0.0
        %600 = vmatprep.mubr.f32.mxu0 0.0
        %v601 = vand.u32 %v220, 4294901760
        %v602 = vsub.f32 %v220, %v601
        %v603 = vand.u32 %v602, 4294901760
        %604 = vmatmul.mubr.f32.gmra.mxu0 %v603
        %v605 = vpop.f32.mrf.mxu0
        %v606 = vadd.f32 %v510, %v605
        %v607 = vpop.f32.mrf.mxu0
        %608 = vmatprep.mubr.f32.mxu0 0.0
        %v609 = vand.u32 %v223, 4294901760
        %v610 = vsub.f32 %v223, %v609
        %v611 = vand.u32 %v610, 4294901760
        %612 = vmatmul.mubr.f32.gmra.mxu0 %v611
        %v613 = vpop.f32.mrf.mxu0
        %v614 = vadd.f32 %v517, %v613
        %v615 = vpop.f32.mrf.mxu0
        %616 = vmatprep.mubr.f32.mxu0 0.0
        %v617 = vand.u32 %v226, 4294901760
        %v618 = vsub.f32 %v226, %v617
        %v619 = vand.u32 %v618, 4294901760
        %620 = vmatmul.mubr.f32.gmra.mxu0 %v619
        %v621 = vpop.f32.mrf.mxu0
        %v622 = vadd.f32 %v524, %v621
        %v623 = vpop.f32.mrf.mxu0
        %624 = vmatprep.mubr.f32.mxu0 0.0
        %v625 = vand.u32 %v229, 4294901760
        %v626 = vsub.f32 %v229, %v625
        %v627 = vand.u32 %v626, 4294901760
        %628 = vmatmul.mubr.f32.gmra.mxu0 %v627
        %v629 = vpop.f32.mrf.mxu0
        %v630 = vadd.f32 %v531, %v629
        %v631 = vpop.f32.mrf.mxu0
        %632 = vdwg.mxu0
        %633 = vmatprep.subr.mxu0 0.0
        %634 = vmatpush1.msra.mxu0 0.0
        %635 = vmatprep.subr.mxu0 0.0
        %636 = vmatpush1.msra.mxu0 0.0
        %637 = vmatprep.subr.mxu0 0.0
        %638 = vmatpush1.msra.mxu0 0.0
        %639 = vmatprep.subr.mxu0 0.0
        %640 = vmatpush1.msra.mxu0 0.0
        %641 = vmatprep.subr.mxu0 0.0
        %642 = vmatpush1.msra.mxu0 0.0
        %643 = vmatprep.subr.mxu0 0.0
        %644 = vmatpush1.msra.mxu0 0.0
        %645 = vmatprep.subr.mxu0 0.0
        %646 = vmatpush1.msra.mxu0 0.0
        %647 = vmatprep.subr.mxu0 0.0
        %648 = vmatpush1.msra.mxu0 0.0
        %649 = vmatprep.subr.mxu0 0.0
        %650 = vmatpush1.msra.mxu0 0.0
        %651 = vmatprep.subr.mxu0 0.0
        %652 = vmatpush1.msra.mxu0 0.0
        %653 = vmatprep.subr.mxu0 0.0
        %654 = vmatpush1.msra.mxu0 0.0
        %655 = vmatprep.subr.mxu0 0.0
        %656 = vmatpush1.msra.mxu0 0.0
        %657 = vmatprep.subr.mxu0 0.0
        %658 = vmatpush1.msra.mxu0 0.0
        %659 = vmatprep.subr.mxu0 0.0
        %660 = vmatpush1.msra.mxu0 0.0
        %661 = vmatprep.subr.mxu0 0.0
        %v662 = vand.u32 %v217, 4294901760
        %v663 = vsub.f32 %v217, %v662
        %v664 = vand.u32 %v663, 4294901760
        %665 = vmatpush1.msra.mxu0 %v664
        %666 = vmatprep.subr.mxu0 0.0
        %v667 = vand.u32 %v216, 4294901760
        %v668 = vsub.f32 %v216, %v667
        %v669 = vand.u32 %v668, 4294901760
        %670 = vmatpush1.msra.mxu0 %v669
        %671 = vmatprep.subr.mxu0 0.0
        %672 = vmatpush2.msra.mxu0 0.0
        %673 = vmatprep.subr.mxu0 0.0
        %674 = vmatpush2.msra.mxu0 0.0
        %675 = vmatprep.subr.mxu0 0.0
        %676 = vmatpush2.msra.mxu0 0.0
        %677 = vmatprep.subr.mxu0 0.0
        %678 = vmatpush2.msra.mxu0 0.0
        %679 = vmatprep.subr.mxu0 0.0
        %680 = vmatpush2.msra.mxu0 0.0
        %681 = vmatprep.subr.mxu0 0.0
        %682 = vmatpush2.msra.mxu0 0.0
        %683 = vmatprep.subr.mxu0 0.0
        %684 = vmatpush2.msra.mxu0 0.0
        %685 = vmatprep.subr.mxu0 0.0
        %686 = vmatpush2.msra.mxu0 0.0
        %687 = vmatprep.subr.mxu0 0.0
        %688 = vmatpush2.msra.mxu0 0.0
        %689 = vmatprep.subr.mxu0 0.0
        %690 = vmatpush2.msra.mxu0 0.0
        %691 = vmatprep.subr.mxu0 0.0
        %692 = vmatpush2.msra.mxu0 0.0
        %693 = vmatprep.subr.mxu0 0.0
        %694 = vmatpush2.msra.mxu0 0.0
        %695 = vmatprep.subr.mxu0 0.0
        %696 = vmatpush2.msra.mxu0 0.0
        %697 = vmatprep.subr.mxu0 0.0
        %698 = vmatpush2.msra.mxu0 0.0
        %699 = vmatprep.subr.mxu0 0.0
        %700 = vmatpush2.msra.mxu0 0.0
        %701 = vmatprep.subr.mxu0 0.0
        %702 = vmatpush2.msra.mxu0 0.0
        %703 = vmatprep.mubr.f32.mxu0 0.0
        %v704 = vand.u32 %v220, 4294901760
        %705 = vmatmul.mubr.f32.gmra.mxu0 %v704
        %v706 = vpop.f32.mrf.mxu0
        %v707 = vadd.f32 %v606, %v706
        %v708 = vpop.f32.mrf.mxu0
        %709 = vmatprep.mubr.f32.mxu0 0.0
        %v710 = vand.u32 %v223, 4294901760
        %711 = vmatmul.mubr.f32.gmra.mxu0 %v710
        %v712 = vpop.f32.mrf.mxu0
        %v713 = vadd.f32 %v614, %v712
        %v714 = vpop.f32.mrf.mxu0
        %715 = vmatprep.mubr.f32.mxu0 0.0
        %v716 = vand.u32 %v226, 4294901760
        %717 = vmatmul.mubr.f32.gmra.mxu0 %v716
        %v718 = vpop.f32.mrf.mxu0
        %v719 = vadd.f32 %v622, %v718
        %v720 = vpop.f32.mrf.mxu0
        %721 = vmatprep.mubr.f32.mxu0 0.0
        %v722 = vand.u32 %v229, 4294901760
        %723 = vmatmul.mubr.f32.gmra.mxu0 %v722
        %v724 = vpop.f32.mrf.mxu0
        %v725 = vadd.f32 %v630, %v724
        %v726 = vpop.f32.mrf.mxu0
        %727 = vdwg.mxu0
        %728 = vmatprep.subr.mxu0 0.0
        %729 = vmatpush1.msra.mxu0 0.0
        %730 = vmatprep.subr.mxu0 0.0
        %731 = vmatpush1.msra.mxu0 0.0
        %732 = vmatprep.subr.mxu0 0.0
        %733 = vmatpush1.msra.mxu0 0.0
        %734 = vmatprep.subr.mxu0 0.0
        %735 = vmatpush1.msra.mxu0 0.0
        %736 = vmatprep.subr.mxu0 0.0
        %737 = vmatpush1.msra.mxu0 0.0
        %738 = vmatprep.subr.mxu0 0.0
        %739 = vmatpush1.msra.mxu0 0.0
        %740 = vmatprep.subr.mxu0 0.0
        %741 = vmatpush1.msra.mxu0 0.0
        %742 = vmatprep.subr.mxu0 0.0
        %743 = vmatpush1.msra.mxu0 0.0
        %744 = vmatprep.subr.mxu0 0.0
        %745 = vmatpush1.msra.mxu0 0.0
        %746 = vmatprep.subr.mxu0 0.0
        %747 = vmatpush1.msra.mxu0 0.0
        %748 = vmatprep.subr.mxu0 0.0
        %749 = vmatpush1.msra.mxu0 0.0
        %750 = vmatprep.subr.mxu0 0.0
        %751 = vmatpush1.msra.mxu0 0.0
        %752 = vmatprep.subr.mxu0 0.0
        %753 = vmatpush1.msra.mxu0 0.0
        %754 = vmatprep.subr.mxu0 0.0
        %755 = vmatpush1.msra.mxu0 0.0
        %756 = vmatprep.subr.mxu0 0.0
        %v757 = vand.u32 %v217, 4294901760
        %758 = vmatpush1.msra.mxu0 %v757
        %759 = vmatprep.subr.mxu0 0.0
        %v760 = vand.u32 %v216, 4294901760
        %761 = vmatpush1.msra.mxu0 %v760
        %762 = vmatprep.subr.mxu0 0.0
        %763 = vmatpush2.msra.mxu0 0.0
        %764 = vmatprep.subr.mxu0 0.0
        %765 = vmatpush2.msra.mxu0 0.0
        %766 = vmatprep.subr.mxu0 0.0
        %767 = vmatpush2.msra.mxu0 0.0
        %768 = vmatprep.subr.mxu0 0.0
        %769 = vmatpush2.msra.mxu0 0.0
        %770 = vmatprep.subr.mxu0 0.0
        %771 = vmatpush2.msra.mxu0 0.0
        %772 = vmatprep.subr.mxu0 0.0
        %773 = vmatpush2.msra.mxu0 0.0
        %774 = vmatprep.subr.mxu0 0.0
        %775 = vmatpush2.msra.mxu0 0.0
        %776 = vmatprep.subr.mxu0 0.0
        %777 = vmatpush2.msra.mxu0 0.0
        %778 = vmatprep.subr.mxu0 0.0
        %779 = vmatpush2.msra.mxu0 0.0
        %780 = vmatprep.subr.mxu0 0.0
        %781 = vmatpush2.msra.mxu0 0.0
        %782 = vmatprep.subr.mxu0 0.0
        %783 = vmatpush2.msra.mxu0 0.0
        %784 = vmatprep.subr.mxu0 0.0
        %785 = vmatpush2.msra.mxu0 0.0
        %786 = vmatprep.subr.mxu0 0.0
        %787 = vmatpush2.msra.mxu0 0.0
        %788 = vmatprep.subr.mxu0 0.0
        %789 = vmatpush2.msra.mxu0 0.0
        %790 = vmatprep.subr.mxu0 0.0
        %791 = vmatpush2.msra.mxu0 0.0
        %792 = vmatprep.subr.mxu0 0.0
        %793 = vmatpush2.msra.mxu0 0.0
        %794 = vmatprep.mubr.f32.mxu0 0.0
        %v795 = vand.u32 %v220, 4294901760
        %796 = vmatmul.mubr.f32.gmra.mxu0 %v795
        %v797 = vpop.f32.mrf.mxu0
        %v798 = vadd.f32 %v707, %v797
        %v799 = vpop.f32.mrf.mxu0
        %800 = vmatprep.mubr.f32.mxu0 0.0
        %v801 = vand.u32 %v223, 4294901760
        %802 = vmatmul.mubr.f32.gmra.mxu0 %v801
        %v803 = vpop.f32.mrf.mxu0
        %v804 = vadd.f32 %v713, %v803
        %v805 = vpop.f32.mrf.mxu0
        %806 = vmatprep.mubr.f32.mxu0 0.0
        %v807 = vand.u32 %v226, 4294901760
        %808 = vmatmul.mubr.f32.gmra.mxu0 %v807
        %v809 = vpop.f32.mrf.mxu0
        %v810 = vadd.f32 %v719, %v809
        %v811 = vpop.f32.mrf.mxu0
        %812 = vmatprep.mubr.f32.mxu0 0.0
        %v813 = vand.u32 %v229, 4294901760
        %814 = vmatmul.mubr.f32.gmra.mxu0 %v813
        %v815 = vpop.f32.mrf.mxu0
        %v816 = vadd.f32 %v725, %v815
        %v817 = vpop.f32.mrf.mxu0
        %818 = vdwg.mxu0
        %v819 = vld [vmem:[%s201] sm:$0xff]
        %v820 = vld [vmem:[%s201 + $0x8] sm:$0xff]
        %v822 = vsel %vm218, %v819, 0
        %v825 = vsel %vm218, %v820, 0
        %827 = vmatprep.subr.mxu0 0.0
        %828 = vmatpush1.msra.mxu0 0.0
        %829 = vmatprep.subr.mxu0 0.0
        %830 = vmatpush1.msra.mxu0 0.0
        %831 = vmatprep.subr.mxu0 0.0
        %832 = vmatpush1.msra.mxu0 0.0
        %833 = vmatprep.subr.mxu0 0.0
        %834 = vmatpush1.msra.mxu0 0.0
        %835 = vmatprep.subr.mxu0 0.0
        %836 = vmatpush1.msra.mxu0 0.0
        %837 = vmatprep.subr.mxu0 0.0
        %838 = vmatpush1.msra.mxu0 0.0
        %839 = vmatprep.subr.mxu0 0.0
        %840 = vmatpush1.msra.mxu0 0.0
        %841 = vmatprep.subr.mxu0 0.0
        %842 = vmatpush1.msra.mxu0 0.0
        %843 = vmatprep.subr.mxu0 0.0
        %844 = vmatpush1.msra.mxu0 0.0
        %845 = vmatprep.subr.mxu0 0.0
        %846 = vmatpush1.msra.mxu0 0.0
        %847 = vmatprep.subr.mxu0 0.0
        %848 = vmatpush1.msra.mxu0 0.0
        %849 = vmatprep.subr.mxu0 0.0
        %850 = vmatpush1.msra.mxu0 0.0
        %851 = vmatprep.subr.mxu0 0.0
        %852 = vmatpush1.msra.mxu0 0.0
        %853 = vmatprep.subr.mxu0 0.0
        %854 = vmatpush1.msra.mxu0 0.0
        %855 = vmatprep.subr.mxu0 0.0
        %v856 = vand.u32 %v804, 4294901760
        %857 = vmatpush1.msra.mxu0 %v856
        %858 = vmatprep.subr.mxu0 0.0
        %v859 = vand.u32 %v798, 4294901760
        %860 = vmatpush1.msra.mxu0 %v859
        %861 = vmatprep.subr.mxu0 0.0
        %862 = vmatpush2.msra.mxu0 0.0
        %863 = vmatprep.subr.mxu0 0.0
        %864 = vmatpush2.msra.mxu0 0.0
        %865 = vmatprep.subr.mxu0 0.0
        %866 = vmatpush2.msra.mxu0 0.0
        %867 = vmatprep.subr.mxu0 0.0
        %868 = vmatpush2.msra.mxu0 0.0
        %869 = vmatprep.subr.mxu0 0.0
        %870 = vmatpush2.msra.mxu0 0.0
        %871 = vmatprep.subr.mxu0 0.0
        %872 = vmatpush2.msra.mxu0 0.0
        %873 = vmatprep.subr.mxu0 0.0
        %874 = vmatpush2.msra.mxu0 0.0
        %875 = vmatprep.subr.mxu0 0.0
        %876 = vmatpush2.msra.mxu0 0.0
        %877 = vmatprep.subr.mxu0 0.0
        %878 = vmatpush2.msra.mxu0 0.0
        %879 = vmatprep.subr.mxu0 0.0
        %880 = vmatpush2.msra.mxu0 0.0
        %881 = vmatprep.subr.mxu0 0.0
        %882 = vmatpush2.msra.mxu0 0.0
        %883 = vmatprep.subr.mxu0 0.0
        %884 = vmatpush2.msra.mxu0 0.0
        %885 = vmatprep.subr.mxu0 0.0
        %886 = vmatpush2.msra.mxu0 0.0
        %887 = vmatprep.subr.mxu0 0.0
        %888 = vmatpush2.msra.mxu0 0.0
        %889 = vmatprep.subr.mxu0 0.0
        %890 = vmatpush2.msra.mxu0 0.0
        %891 = vmatprep.subr.mxu0 0.0
        %892 = vmatpush2.msra.mxu0 0.0
        %893 = vmatprep.mubr.f32.mxu0 0.0
        %v894 = vand.u32 %v822, 4294901760
        %v895 = vsub.f32 %v822, %v894
        %v896 = vand.u32 %v895, 4294901760
        %v897 = vsub.f32 %v895, %v896
        %v898 = vand.u32 %v897, 4294901760
        %899 = vmatmul.mubr.f32.gmra.mxu0 %v898
        %v900 = vpop.f32.mrf.mxu0
        %v901 = vadd.f32 0.0, %v900
        %v902 = vpop.f32.mrf.mxu0
        %903 = vmatprep.mubr.f32.mxu0 0.0
        %v904 = vand.u32 %v825, 4294901760
        %v905 = vsub.f32 %v825, %v904
        %v906 = vand.u32 %v905, 4294901760
        %v907 = vsub.f32 %v905, %v906
        %v908 = vand.u32 %v907, 4294901760
        %909 = vmatmul.mubr.f32.gmra.mxu0 %v908
        %v910 = vpop.f32.mrf.mxu0
        %v911 = vadd.f32 0.0, %v910
        %v912 = vpop.f32.mrf.mxu0
        %913 = vdwg.mxu0
        %914 = vmatprep.subr.mxu0 0.0
        %915 = vmatpush1.msra.mxu0 0.0
        %916 = vmatprep.subr.mxu0 0.0
        %917 = vmatpush1.msra.mxu0 0.0
        %918 = vmatprep.subr.mxu0 0.0
        %919 = vmatpush1.msra.mxu0 0.0
        %920 = vmatprep.subr.mxu0 0.0
        %921 = vmatpush1.msra.mxu0 0.0
        %922 = vmatprep.subr.mxu0 0.0
        %923 = vmatpush1.msra.mxu0 0.0
        %924 = vmatprep.subr.mxu0 0.0
        %925 = vmatpush1.msra.mxu0 0.0
        %926 = vmatprep.subr.mxu0 0.0
        %927 = vmatpush1.msra.mxu0 0.0
        %928 = vmatprep.subr.mxu0 0.0
        %929 = vmatpush1.msra.mxu0 0.0
        %930 = vmatprep.subr.mxu0 0.0
        %931 = vmatpush1.msra.mxu0 0.0
        %932 = vmatprep.subr.mxu0 0.0
        %933 = vmatpush1.msra.mxu0 0.0
        %934 = vmatprep.subr.mxu0 0.0
        %935 = vmatpush1.msra.mxu0 0.0
        %936 = vmatprep.subr.mxu0 0.0
        %937 = vmatpush1.msra.mxu0 0.0
        %938 = vmatprep.subr.mxu0 0.0
        %939 = vmatpush1.msra.mxu0 0.0
        %940 = vmatprep.subr.mxu0 0.0
        %941 = vmatpush1.msra.mxu0 0.0
        %942 = vmatprep.subr.mxu0 0.0
        %v943 = vand.u32 %v804, 4294901760
        %v944 = vsub.f32 %v804, %v943
        %v945 = vand.u32 %v944, 4294901760
        %v946 = vsub.f32 %v944, %v945
        %v947 = vand.u32 %v946, 4294901760
        %948 = vmatpush1.msra.mxu0 %v947
        %949 = vmatprep.subr.mxu0 0.0
        %v950 = vand.u32 %v798, 4294901760
        %v951 = vsub.f32 %v798, %v950
        %v952 = vand.u32 %v951, 4294901760
        %v953 = vsub.f32 %v951, %v952
        %v954 = vand.u32 %v953, 4294901760
        %955 = vmatpush1.msra.mxu0 %v954
        %956 = vmatprep.subr.mxu0 0.0
        %957 = vmatpush2.msra.mxu0 0.0
        %958 = vmatprep.subr.mxu0 0.0
        %959 = vmatpush2.msra.mxu0 0.0
        %960 = vmatprep.subr.mxu0 0.0
        %961 = vmatpush2.msra.mxu0 0.0
        %962 = vmatprep.subr.mxu0 0.0
        %963 = vmatpush2.msra.mxu0 0.0
        %964 = vmatprep.subr.mxu0 0.0
        %965 = vmatpush2.msra.mxu0 0.0
        %966 = vmatprep.subr.mxu0 0.0
        %967 = vmatpush2.msra.mxu0 0.0
        %968 = vmatprep.subr.mxu0 0.0
        %969 = vmatpush2.msra.mxu0 0.0
        %970 = vmatprep.subr.mxu0 0.0
        %971 = vmatpush2.msra.mxu0 0.0
        %972 = vmatprep.subr.mxu0 0.0
        %973 = vmatpush2.msra.mxu0 0.0
        %974 = vmatprep.subr.mxu0 0.0
        %975 = vmatpush2.msra.mxu0 0.0
        %976 = vmatprep.subr.mxu0 0.0
        %977 = vmatpush2.msra.mxu0 0.0
        %978 = vmatprep.subr.mxu0 0.0
        %979 = vmatpush2.msra.mxu0 0.0
        %980 = vmatprep.subr.mxu0 0.0
        %981 = vmatpush2.msra.mxu0 0.0
        %982 = vmatprep.subr.mxu0 0.0
        %983 = vmatpush2.msra.mxu0 0.0
        %984 = vmatprep.subr.mxu0 0.0
        %985 = vmatpush2.msra.mxu0 0.0
        %986 = vmatprep.subr.mxu0 0.0
        %987 = vmatpush2.msra.mxu0 0.0
        %988 = vmatprep.mubr.f32.mxu0 0.0
        %v989 = vand.u32 %v822, 4294901760
        %990 = vmatmul.mubr.f32.gmra.mxu0 %v989
        %v991 = vpop.f32.mrf.mxu0
        %v992 = vadd.f32 %v901, %v991
        %v993 = vpop.f32.mrf.mxu0
        %994 = vmatprep.mubr.f32.mxu0 0.0
        %v995 = vand.u32 %v825, 4294901760
        %996 = vmatmul.mubr.f32.gmra.mxu0 %v995
        %v997 = vpop.f32.mrf.mxu0
        %v998 = vadd.f32 %v911, %v997
        %v999 = vpop.f32.mrf.mxu0
        %1000 = vdwg.mxu0
        %1001 = vmatprep.subr.mxu0 0.0
        %1002 = vmatpush1.msra.mxu0 0.0
        %1003 = vmatprep.subr.mxu0 0.0
        %1004 = vmatpush1.msra.mxu0 0.0
        %1005 = vmatprep.subr.mxu0 0.0
        %1006 = vmatpush1.msra.mxu0 0.0
        %1007 = vmatprep.subr.mxu0 0.0
        %1008 = vmatpush1.msra.mxu0 0.0
        %1009 = vmatprep.subr.mxu0 0.0
        %1010 = vmatpush1.msra.mxu0 0.0
        %1011 = vmatprep.subr.mxu0 0.0
        %1012 = vmatpush1.msra.mxu0 0.0
        %1013 = vmatprep.subr.mxu0 0.0
        %1014 = vmatpush1.msra.mxu0 0.0
        %1015 = vmatprep.subr.mxu0 0.0
        %1016 = vmatpush1.msra.mxu0 0.0
        %1017 = vmatprep.subr.mxu0 0.0
        %1018 = vmatpush1.msra.mxu0 0.0
        %1019 = vmatprep.subr.mxu0 0.0
        %1020 = vmatpush1.msra.mxu0 0.0
        %1021 = vmatprep.subr.mxu0 0.0
        %1022 = vmatpush1.msra.mxu0 0.0
        %1023 = vmatprep.subr.mxu0 0.0
        %1024 = vmatpush1.msra.mxu0 0.0
        %1025 = vmatprep.subr.mxu0 0.0
        %1026 = vmatpush1.msra.mxu0 0.0
        %1027 = vmatprep.subr.mxu0 0.0
        %1028 = vmatpush1.msra.mxu0 0.0
        %1029 = vmatprep.subr.mxu0 0.0
        %v1030 = vand.u32 %v804, 4294901760
        %v1031 = vsub.f32 %v804, %v1030
        %1032 = vmatpush1.msra.mxu0 %v1031
        %1033 = vmatprep.subr.mxu0 0.0
        %v1034 = vand.u32 %v798, 4294901760
        %v1035 = vsub.f32 %v798, %v1034
        %1036 = vmatpush1.msra.mxu0 %v1035
        %1037 = vmatprep.subr.mxu0 0.0
        %1038 = vmatpush2.msra.mxu0 0.0
        %1039 = vmatprep.subr.mxu0 0.0
        %1040 = vmatpush2.msra.mxu0 0.0
        %1041 = vmatprep.subr.mxu0 0.0
        %1042 = vmatpush2.msra.mxu0 0.0
        %1043 = vmatprep.subr.mxu0 0.0
        %1044 = vmatpush2.msra.mxu0 0.0
        %1045 = vmatprep.subr.mxu0 0.0
        %1046 = vmatpush2.msra.mxu0 0.0
        %1047 = vmatprep.subr.mxu0 0.0
        %1048 = vmatpush2.msra.mxu0 0.0
        %1049 = vmatprep.subr.mxu0 0.0
        %1050 = vmatpush2.msra.mxu0 0.0
        %1051 = vmatprep.subr.mxu0 0.0
        %1052 = vmatpush2.msra.mxu0 0.0
        %1053 = vmatprep.subr.mxu0 0.0
        %1054 = vmatpush2.msra.mxu0 0.0
        %1055 = vmatprep.subr.mxu0 0.0
        %1056 = vmatpush2.msra.mxu0 0.0
        %1057 = vmatprep.subr.mxu0 0.0
        %1058 = vmatpush2.msra.mxu0 0.0
        %1059 = vmatprep.subr.mxu0 0.0
        %1060 = vmatpush2.msra.mxu0 0.0
        %1061 = vmatprep.subr.mxu0 0.0
        %1062 = vmatpush2.msra.mxu0 0.0
        %1063 = vmatprep.subr.mxu0 0.0
        %1064 = vmatpush2.msra.mxu0 0.0
        %1065 = vmatprep.subr.mxu0 0.0
        %1066 = vmatpush2.msra.mxu0 0.0
        %1067 = vmatprep.subr.mxu0 0.0
        %1068 = vmatpush2.msra.mxu0 0.0
        %1069 = vmatprep.mubr.f32.mxu0 0.0
        %v1070 = vand.u32 %v822, 4294901760
        %v1071 = vsub.f32 %v822, %v1070
        %1072 = vmatmul.mubr.f32.gmra.mxu0 %v1071
        %v1073 = vpop.f32.mrf.mxu0
        %v1074 = vadd.f32 %v992, %v1073
        %v1075 = vpop.f32.mrf.mxu0
        %1076 = vmatprep.mubr.f32.mxu0 0.0
        %v1077 = vand.u32 %v825, 4294901760
        %v1078 = vsub.f32 %v825, %v1077
        %1079 = vmatmul.mubr.f32.gmra.mxu0 %v1078
        %v1080 = vpop.f32.mrf.mxu0
        %v1081 = vadd.f32 %v998, %v1080
        %v1082 = vpop.f32.mrf.mxu0
        %1083 = vdwg.mxu0
        %1084 = vmatprep.subr.mxu0 0.0
        %1085 = vmatpush1.msra.mxu0 0.0
        %1086 = vmatprep.subr.mxu0 0.0
        %1087 = vmatpush1.msra.mxu0 0.0
        %1088 = vmatprep.subr.mxu0 0.0
        %1089 = vmatpush1.msra.mxu0 0.0
        %1090 = vmatprep.subr.mxu0 0.0
        %1091 = vmatpush1.msra.mxu0 0.0
        %1092 = vmatprep.subr.mxu0 0.0
        %1093 = vmatpush1.msra.mxu0 0.0
        %1094 = vmatprep.subr.mxu0 0.0
        %1095 = vmatpush1.msra.mxu0 0.0
        %1096 = vmatprep.subr.mxu0 0.0
        %1097 = vmatpush1.msra.mxu0 0.0
        %1098 = vmatprep.subr.mxu0 0.0
        %1099 = vmatpush1.msra.mxu0 0.0
        %1100 = vmatprep.subr.mxu0 0.0
        %1101 = vmatpush1.msra.mxu0 0.0
        %1102 = vmatprep.subr.mxu0 0.0
        %1103 = vmatpush1.msra.mxu0 0.0
        %1104 = vmatprep.subr.mxu0 0.0
        %1105 = vmatpush1.msra.mxu0 0.0
        %1106 = vmatprep.subr.mxu0 0.0
        %1107 = vmatpush1.msra.mxu0 0.0
        %1108 = vmatprep.subr.mxu0 0.0
        %1109 = vmatpush1.msra.mxu0 0.0
        %1110 = vmatprep.subr.mxu0 0.0
        %1111 = vmatpush1.msra.mxu0 0.0
        %1112 = vmatprep.subr.mxu0 0.0
        %v1113 = vand.u32 %v804, 4294901760
        %1114 = vmatpush1.msra.mxu0 %v1113
        %1115 = vmatprep.subr.mxu0 0.0
        %v1116 = vand.u32 %v798, 4294901760
        %1117 = vmatpush1.msra.mxu0 %v1116
        %1118 = vmatprep.subr.mxu0 0.0
        %1119 = vmatpush2.msra.mxu0 0.0
        %1120 = vmatprep.subr.mxu0 0.0
        %1121 = vmatpush2.msra.mxu0 0.0
        %1122 = vmatprep.subr.mxu0 0.0
        %1123 = vmatpush2.msra.mxu0 0.0
        %1124 = vmatprep.subr.mxu0 0.0
        %1125 = vmatpush2.msra.mxu0 0.0
        %1126 = vmatprep.subr.mxu0 0.0
        %1127 = vmatpush2.msra.mxu0 0.0
        %1128 = vmatprep.subr.mxu0 0.0
        %1129 = vmatpush2.msra.mxu0 0.0
        %1130 = vmatprep.subr.mxu0 0.0
        %1131 = vmatpush2.msra.mxu0 0.0
        %1132 = vmatprep.subr.mxu0 0.0
        %1133 = vmatpush2.msra.mxu0 0.0
        %1134 = vmatprep.subr.mxu0 0.0
        %1135 = vmatpush2.msra.mxu0 0.0
        %1136 = vmatprep.subr.mxu0 0.0
        %1137 = vmatpush2.msra.mxu0 0.0
        %1138 = vmatprep.subr.mxu0 0.0
        %1139 = vmatpush2.msra.mxu0 0.0
        %1140 = vmatprep.subr.mxu0 0.0
        %1141 = vmatpush2.msra.mxu0 0.0
        %1142 = vmatprep.subr.mxu0 0.0
        %1143 = vmatpush2.msra.mxu0 0.0
        %1144 = vmatprep.subr.mxu0 0.0
        %1145 = vmatpush2.msra.mxu0 0.0
        %1146 = vmatprep.subr.mxu0 0.0
        %1147 = vmatpush2.msra.mxu0 0.0
        %1148 = vmatprep.subr.mxu0 0.0
        %1149 = vmatpush2.msra.mxu0 0.0
        %1150 = vmatprep.mubr.f32.mxu0 0.0
        %v1151 = vand.u32 %v822, 4294901760
        %v1152 = vsub.f32 %v822, %v1151
        %v1153 = vand.u32 %v1152, 4294901760
        %1154 = vmatmul.mubr.f32.gmra.mxu0 %v1153
        %v1155 = vpop.f32.mrf.mxu0
        %v1156 = vadd.f32 %v1074, %v1155
        %v1157 = vpop.f32.mrf.mxu0
        %1158 = vmatprep.mubr.f32.mxu0 0.0
        %v1159 = vand.u32 %v825, 4294901760
        %v1160 = vsub.f32 %v825, %v1159
        %v1161 = vand.u32 %v1160, 4294901760
        %1162 = vmatmul.mubr.f32.gmra.mxu0 %v1161
        %v1163 = vpop.f32.mrf.mxu0
        %v1164 = vadd.f32 %v1081, %v1163
        %v1165 = vpop.f32.mrf.mxu0
        %1166 = vdwg.mxu0
        %1167 = vmatprep.subr.mxu0 0.0
        %1168 = vmatpush1.msra.mxu0 0.0
        %1169 = vmatprep.subr.mxu0 0.0
        %1170 = vmatpush1.msra.mxu0 0.0
        %1171 = vmatprep.subr.mxu0 0.0
        %1172 = vmatpush1.msra.mxu0 0.0
        %1173 = vmatprep.subr.mxu0 0.0
        %1174 = vmatpush1.msra.mxu0 0.0
        %1175 = vmatprep.subr.mxu0 0.0
        %1176 = vmatpush1.msra.mxu0 0.0
        %1177 = vmatprep.subr.mxu0 0.0
        %1178 = vmatpush1.msra.mxu0 0.0
        %1179 = vmatprep.subr.mxu0 0.0
        %1180 = vmatpush1.msra.mxu0 0.0
        %1181 = vmatprep.subr.mxu0 0.0
        %1182 = vmatpush1.msra.mxu0 0.0
        %1183 = vmatprep.subr.mxu0 0.0
        %1184 = vmatpush1.msra.mxu0 0.0
        %1185 = vmatprep.subr.mxu0 0.0
        %1186 = vmatpush1.msra.mxu0 0.0
        %1187 = vmatprep.subr.mxu0 0.0
        %1188 = vmatpush1.msra.mxu0 0.0
        %1189 = vmatprep.subr.mxu0 0.0
        %1190 = vmatpush1.msra.mxu0 0.0
        %1191 = vmatprep.subr.mxu0 0.0
        %1192 = vmatpush1.msra.mxu0 0.0
        %1193 = vmatprep.subr.mxu0 0.0
        %1194 = vmatpush1.msra.mxu0 0.0
        %1195 = vmatprep.subr.mxu0 0.0
        %v1196 = vand.u32 %v804, 4294901760
        %v1197 = vsub.f32 %v804, %v1196
        %v1198 = vand.u32 %v1197, 4294901760
        %1199 = vmatpush1.msra.mxu0 %v1198
        %1200 = vmatprep.subr.mxu0 0.0
        %v1201 = vand.u32 %v798, 4294901760
        %v1202 = vsub.f32 %v798, %v1201
        %v1203 = vand.u32 %v1202, 4294901760
        %1204 = vmatpush1.msra.mxu0 %v1203
        %1205 = vmatprep.subr.mxu0 0.0
        %1206 = vmatpush2.msra.mxu0 0.0
        %1207 = vmatprep.subr.mxu0 0.0
        %1208 = vmatpush2.msra.mxu0 0.0
        %1209 = vmatprep.subr.mxu0 0.0
        %1210 = vmatpush2.msra.mxu0 0.0
        %1211 = vmatprep.subr.mxu0 0.0
        %1212 = vmatpush2.msra.mxu0 0.0
        %1213 = vmatprep.subr.mxu0 0.0
        %1214 = vmatpush2.msra.mxu0 0.0
        %1215 = vmatprep.subr.mxu0 0.0
        %1216 = vmatpush2.msra.mxu0 0.0
        %1217 = vmatprep.subr.mxu0 0.0
        %1218 = vmatpush2.msra.mxu0 0.0
        %1219 = vmatprep.subr.mxu0 0.0
        %1220 = vmatpush2.msra.mxu0 0.0
        %1221 = vmatprep.subr.mxu0 0.0
        %1222 = vmatpush2.msra.mxu0 0.0
        %1223 = vmatprep.subr.mxu0 0.0
        %1224 = vmatpush2.msra.mxu0 0.0
        %1225 = vmatprep.subr.mxu0 0.0
        %1226 = vmatpush2.msra.mxu0 0.0
        %1227 = vmatprep.subr.mxu0 0.0
        %1228 = vmatpush2.msra.mxu0 0.0
        %1229 = vmatprep.subr.mxu0 0.0
        %1230 = vmatpush2.msra.mxu0 0.0
        %1231 = vmatprep.subr.mxu0 0.0
        %1232 = vmatpush2.msra.mxu0 0.0
        %1233 = vmatprep.subr.mxu0 0.0
        %1234 = vmatpush2.msra.mxu0 0.0
        %1235 = vmatprep.subr.mxu0 0.0
        %1236 = vmatpush2.msra.mxu0 0.0
        %1237 = vmatprep.mubr.f32.mxu0 0.0
        %v1238 = vand.u32 %v822, 4294901760
        %1239 = vmatmul.mubr.f32.gmra.mxu0 %v1238
        %v1240 = vpop.f32.mrf.mxu0
        %v1241 = vadd.f32 %v1156, %v1240
        %v1242 = vpop.f32.mrf.mxu0
        %1243 = vmatprep.mubr.f32.mxu0 0.0
        %v1244 = vand.u32 %v825, 4294901760
        %1245 = vmatmul.mubr.f32.gmra.mxu0 %v1244
        %v1246 = vpop.f32.mrf.mxu0
        %v1247 = vadd.f32 %v1164, %v1246
        %v1248 = vpop.f32.mrf.mxu0
        %1249 = vdwg.mxu0
        %1250 = vmatprep.subr.mxu0 0.0
        %1251 = vmatpush1.msra.mxu0 0.0
        %1252 = vmatprep.subr.mxu0 0.0
        %1253 = vmatpush1.msra.mxu0 0.0
        %1254 = vmatprep.subr.mxu0 0.0
        %1255 = vmatpush1.msra.mxu0 0.0
        %1256 = vmatprep.subr.mxu0 0.0
        %1257 = vmatpush1.msra.mxu0 0.0
        %1258 = vmatprep.subr.mxu0 0.0
        %1259 = vmatpush1.msra.mxu0 0.0
        %1260 = vmatprep.subr.mxu0 0.0
        %1261 = vmatpush1.msra.mxu0 0.0
        %1262 = vmatprep.subr.mxu0 0.0
        %1263 = vmatpush1.msra.mxu0 0.0
        %1264 = vmatprep.subr.mxu0 0.0
        %1265 = vmatpush1.msra.mxu0 0.0
        %1266 = vmatprep.subr.mxu0 0.0
        %1267 = vmatpush1.msra.mxu0 0.0
        %1268 = vmatprep.subr.mxu0 0.0
        %1269 = vmatpush1.msra.mxu0 0.0
        %1270 = vmatprep.subr.mxu0 0.0
        %1271 = vmatpush1.msra.mxu0 0.0
        %1272 = vmatprep.subr.mxu0 0.0
        %1273 = vmatpush1.msra.mxu0 0.0
        %1274 = vmatprep.subr.mxu0 0.0
        %1275 = vmatpush1.msra.mxu0 0.0
        %1276 = vmatprep.subr.mxu0 0.0
        %1277 = vmatpush1.msra.mxu0 0.0
        %1278 = vmatprep.subr.mxu0 0.0
        %v1279 = vand.u32 %v804, 4294901760
        %1280 = vmatpush1.msra.mxu0 %v1279
        %1281 = vmatprep.subr.mxu0 0.0
        %v1282 = vand.u32 %v798, 4294901760
        %1283 = vmatpush1.msra.mxu0 %v1282
        %1284 = vmatprep.subr.mxu0 0.0
        %1285 = vmatpush2.msra.mxu0 0.0
        %1286 = vmatprep.subr.mxu0 0.0
        %1287 = vmatpush2.msra.mxu0 0.0
        %1288 = vmatprep.subr.mxu0 0.0
        %1289 = vmatpush2.msra.mxu0 0.0
        %1290 = vmatprep.subr.mxu0 0.0
        %1291 = vmatpush2.msra.mxu0 0.0
        %1292 = vmatprep.subr.mxu0 0.0
        %1293 = vmatpush2.msra.mxu0 0.0
        %1294 = vmatprep.subr.mxu0 0.0
        %1295 = vmatpush2.msra.mxu0 0.0
        %1296 = vmatprep.subr.mxu0 0.0
        %1297 = vmatpush2.msra.mxu0 0.0
        %1298 = vmatprep.subr.mxu0 0.0
        %1299 = vmatpush2.msra.mxu0 0.0
        %1300 = vmatprep.subr.mxu0 0.0
        %1301 = vmatpush2.msra.mxu0 0.0
        %1302 = vmatprep.subr.mxu0 0.0
        %1303 = vmatpush2.msra.mxu0 0.0
        %1304 = vmatprep.subr.mxu0 0.0
        %1305 = vmatpush2.msra.mxu0 0.0
        %1306 = vmatprep.subr.mxu0 0.0
        %1307 = vmatpush2.msra.mxu0 0.0
        %1308 = vmatprep.subr.mxu0 0.0
        %1309 = vmatpush2.msra.mxu0 0.0
        %1310 = vmatprep.subr.mxu0 0.0
        %1311 = vmatpush2.msra.mxu0 0.0
        %1312 = vmatprep.subr.mxu0 0.0
        %1313 = vmatpush2.msra.mxu0 0.0
        %1314 = vmatprep.subr.mxu0 0.0
        %1315 = vmatpush2.msra.mxu0 0.0
        %1316 = vmatprep.mubr.f32.mxu0 0.0
        %v1317 = vand.u32 %v822, 4294901760
        %1318 = vmatmul.mubr.f32.gmra.mxu0 %v1317
        %v1319 = vpop.f32.mrf.mxu0
        %v1320 = vadd.f32 %v1241, %v1319
        %v1321 = vpop.f32.mrf.mxu0
        %1322 = vmatprep.mubr.f32.mxu0 0.0
        %v1323 = vand.u32 %v825, 4294901760
        %1324 = vmatmul.mubr.f32.gmra.mxu0 %v1323
        %v1325 = vpop.f32.mrf.mxu0
        %v1326 = vadd.f32 %v1247, %v1325
        %v1327 = vpop.f32.mrf.mxu0
        %1328 = vdwg.mxu0
        %1329 = vmatprep.subr.mxu0 0.0
        %1330 = vmatpush1.msra.mxu0 0.0
        %1331 = vmatprep.subr.mxu0 0.0
        %1332 = vmatpush1.msra.mxu0 0.0
        %1333 = vmatprep.subr.mxu0 0.0
        %1334 = vmatpush1.msra.mxu0 0.0
        %1335 = vmatprep.subr.mxu0 0.0
        %1336 = vmatpush1.msra.mxu0 0.0
        %1337 = vmatprep.subr.mxu0 0.0
        %1338 = vmatpush1.msra.mxu0 0.0
        %1339 = vmatprep.subr.mxu0 0.0
        %1340 = vmatpush1.msra.mxu0 0.0
        %1341 = vmatprep.subr.mxu0 0.0
        %1342 = vmatpush1.msra.mxu0 0.0
        %1343 = vmatprep.subr.mxu0 0.0
        %1344 = vmatpush1.msra.mxu0 0.0
        %1345 = vmatprep.subr.mxu0 0.0
        %1346 = vmatpush1.msra.mxu0 0.0
        %1347 = vmatprep.subr.mxu0 0.0
        %1348 = vmatpush1.msra.mxu0 0.0
        %1349 = vmatprep.subr.mxu0 0.0
        %1350 = vmatpush1.msra.mxu0 0.0
        %1351 = vmatprep.subr.mxu0 0.0
        %1352 = vmatpush1.msra.mxu0 0.0
        %1353 = vmatprep.subr.mxu0 0.0
        %1354 = vmatpush1.msra.mxu0 0.0
        %1355 = vmatprep.subr.mxu0 0.0
        %1356 = vmatpush1.msra.mxu0 0.0
        %1357 = vmatprep.subr.mxu0 0.0
        %v1358 = vand.u32 %v816, 4294901760
        %1359 = vmatpush1.msra.mxu0 %v1358
        %1360 = vmatprep.subr.mxu0 0.0
        %v1361 = vand.u32 %v810, 4294901760
        %1362 = vmatpush1.msra.mxu0 %v1361
        %1363 = vmatprep.subr.mxu0 0.0
        %1364 = vmatpush2.msra.mxu0 0.0
        %1365 = vmatprep.subr.mxu0 0.0
        %1366 = vmatpush2.msra.mxu0 0.0
        %1367 = vmatprep.subr.mxu0 0.0
        %1368 = vmatpush2.msra.mxu0 0.0
        %1369 = vmatprep.subr.mxu0 0.0
        %1370 = vmatpush2.msra.mxu0 0.0
        %1371 = vmatprep.subr.mxu0 0.0
        %1372 = vmatpush2.msra.mxu0 0.0
        %1373 = vmatprep.subr.mxu0 0.0
        %1374 = vmatpush2.msra.mxu0 0.0
        %1375 = vmatprep.subr.mxu0 0.0
        %1376 = vmatpush2.msra.mxu0 0.0
        %1377 = vmatprep.subr.mxu0 0.0
        %1378 = vmatpush2.msra.mxu0 0.0
        %1379 = vmatprep.subr.mxu0 0.0
        %1380 = vmatpush2.msra.mxu0 0.0
        %1381 = vmatprep.subr.mxu0 0.0
        %1382 = vmatpush2.msra.mxu0 0.0
        %1383 = vmatprep.subr.mxu0 0.0
        %1384 = vmatpush2.msra.mxu0 0.0
        %1385 = vmatprep.subr.mxu0 0.0
        %1386 = vmatpush2.msra.mxu0 0.0
        %1387 = vmatprep.subr.mxu0 0.0
        %1388 = vmatpush2.msra.mxu0 0.0
        %1389 = vmatprep.subr.mxu0 0.0
        %1390 = vmatpush2.msra.mxu0 0.0
        %1391 = vmatprep.subr.mxu0 0.0
        %1392 = vmatpush2.msra.mxu0 0.0
        %1393 = vmatprep.subr.mxu0 0.0
        %1394 = vmatpush2.msra.mxu0 0.0
        %1395 = vmatprep.mubr.f32.mxu0 0.0
        %v1396 = vand.u32 %v822, 4294901760
        %v1397 = vsub.f32 %v822, %v1396
        %v1398 = vand.u32 %v1397, 4294901760
        %v1399 = vsub.f32 %v1397, %v1398
        %v1400 = vand.u32 %v1399, 4294901760
        %1401 = vmatmul.mubr.f32.gmra.mxu0 %v1400
        %v1402 = vpop.f32.mrf.mxu0
        %v1403 = vadd.f32 0.0, %v1402
        %v1404 = vpop.f32.mrf.mxu0
        %1405 = vmatprep.mubr.f32.mxu0 0.0
        %v1406 = vand.u32 %v825, 4294901760
        %v1407 = vsub.f32 %v825, %v1406
        %v1408 = vand.u32 %v1407, 4294901760
        %v1409 = vsub.f32 %v1407, %v1408
        %v1410 = vand.u32 %v1409, 4294901760
        %1411 = vmatmul.mubr.f32.gmra.mxu0 %v1410
        %v1412 = vpop.f32.mrf.mxu0
        %v1413 = vadd.f32 0.0, %v1412
        %v1414 = vpop.f32.mrf.mxu0
        %1415 = vdwg.mxu0
        %1416 = vmatprep.subr.mxu0 0.0
        %1417 = vmatpush1.msra.mxu0 0.0
        %1418 = vmatprep.subr.mxu0 0.0
        %1419 = vmatpush1.msra.mxu0 0.0
        %1420 = vmatprep.subr.mxu0 0.0
        %1421 = vmatpush1.msra.mxu0 0.0
        %1422 = vmatprep.subr.mxu0 0.0
        %1423 = vmatpush1.msra.mxu0 0.0
        %1424 = vmatprep.subr.mxu0 0.0
        %1425 = vmatpush1.msra.mxu0 0.0
        %1426 = vmatprep.subr.mxu0 0.0
        %1427 = vmatpush1.msra.mxu0 0.0
        %1428 = vmatprep.subr.mxu0 0.0
        %1429 = vmatpush1.msra.mxu0 0.0
        %1430 = vmatprep.subr.mxu0 0.0
        %1431 = vmatpush1.msra.mxu0 0.0
        %1432 = vmatprep.subr.mxu0 0.0
        %1433 = vmatpush1.msra.mxu0 0.0
        %1434 = vmatprep.subr.mxu0 0.0
        %1435 = vmatpush1.msra.mxu0 0.0
        %1436 = vmatprep.subr.mxu0 0.0
        %1437 = vmatpush1.msra.mxu0 0.0
        %1438 = vmatprep.subr.mxu0 0.0
        %1439 = vmatpush1.msra.mxu0 0.0
        %1440 = vmatprep.subr.mxu0 0.0
        %1441 = vmatpush1.msra.mxu0 0.0
        %1442 = vmatprep.subr.mxu0 0.0
        %1443 = vmatpush1.msra.mxu0 0.0
        %1444 = vmatprep.subr.mxu0 0.0
        %v1445 = vand.u32 %v816, 4294901760
        %v1446 = vsub.f32 %v816, %v1445
        %v1447 = vand.u32 %v1446, 4294901760
        %v1448 = vsub.f32 %v1446, %v1447
        %v1449 = vand.u32 %v1448, 4294901760
        %1450 = vmatpush1.msra.mxu0 %v1449
        %1451 = vmatprep.subr.mxu0 0.0
        %v1452 = vand.u32 %v810, 4294901760
        %v1453 = vsub.f32 %v810, %v1452
        %v1454 = vand.u32 %v1453, 4294901760
        %v1455 = vsub.f32 %v1453, %v1454
        %v1456 = vand.u32 %v1455, 4294901760
        %1457 = vmatpush1.msra.mxu0 %v1456
        %1458 = vmatprep.subr.mxu0 0.0
        %1459 = vmatpush2.msra.mxu0 0.0
        %1460 = vmatprep.subr.mxu0 0.0
        %1461 = vmatpush2.msra.mxu0 0.0
        %1462 = vmatprep.subr.mxu0 0.0
        %1463 = vmatpush2.msra.mxu0 0.0
        %1464 = vmatprep.subr.mxu0 0.0
        %1465 = vmatpush2.msra.mxu0 0.0
        %1466 = vmatprep.subr.mxu0 0.0
        %1467 = vmatpush2.msra.mxu0 0.0
        %1468 = vmatprep.subr.mxu0 0.0
        %1469 = vmatpush2.msra.mxu0 0.0
        %1470 = vmatprep.subr.mxu0 0.0
        %1471 = vmatpush2.msra.mxu0 0.0
        %1472 = vmatprep.subr.mxu0 0.0
        %1473 = vmatpush2.msra.mxu0 0.0
        %1474 = vmatprep.subr.mxu0 0.0
        %1475 = vmatpush2.msra.mxu0 0.0
        %1476 = vmatprep.subr.mxu0 0.0
        %1477 = vmatpush2.msra.mxu0 0.0
        %1478 = vmatprep.subr.mxu0 0.0
        %1479 = vmatpush2.msra.mxu0 0.0
        %1480 = vmatprep.subr.mxu0 0.0
        %1481 = vmatpush2.msra.mxu0 0.0
        %1482 = vmatprep.subr.mxu0 0.0
        %1483 = vmatpush2.msra.mxu0 0.0
        %1484 = vmatprep.subr.mxu0 0.0
        %1485 = vmatpush2.msra.mxu0 0.0
        %1486 = vmatprep.subr.mxu0 0.0
        %1487 = vmatpush2.msra.mxu0 0.0
        %1488 = vmatprep.subr.mxu0 0.0
        %1489 = vmatpush2.msra.mxu0 0.0
        %1490 = vmatprep.mubr.f32.mxu0 0.0
        %v1491 = vand.u32 %v822, 4294901760
        %1492 = vmatmul.mubr.f32.gmra.mxu0 %v1491
        %v1493 = vpop.f32.mrf.mxu0
        %v1494 = vadd.f32 %v1403, %v1493
        %v1495 = vpop.f32.mrf.mxu0
        %1496 = vmatprep.mubr.f32.mxu0 0.0
        %v1497 = vand.u32 %v825, 4294901760
        %1498 = vmatmul.mubr.f32.gmra.mxu0 %v1497
        %v1499 = vpop.f32.mrf.mxu0
        %v1500 = vadd.f32 %v1413, %v1499
        %v1501 = vpop.f32.mrf.mxu0
        %1502 = vdwg.mxu0
        %1503 = vmatprep.subr.mxu0 0.0
        %1504 = vmatpush1.msra.mxu0 0.0
        %1505 = vmatprep.subr.mxu0 0.0
        %1506 = vmatpush1.msra.mxu0 0.0
        %1507 = vmatprep.subr.mxu0 0.0
        %1508 = vmatpush1.msra.mxu0 0.0
        %1509 = vmatprep.subr.mxu0 0.0
        %1510 = vmatpush1.msra.mxu0 0.0
        %1511 = vmatprep.subr.mxu0 0.0
        %1512 = vmatpush1.msra.mxu0 0.0
        %1513 = vmatprep.subr.mxu0 0.0
        %1514 = vmatpush1.msra.mxu0 0.0
        %1515 = vmatprep.subr.mxu0 0.0
        %1516 = vmatpush1.msra.mxu0 0.0
        %1517 = vmatprep.subr.mxu0 0.0
        %1518 = vmatpush1.msra.mxu0 0.0
        %1519 = vmatprep.subr.mxu0 0.0
        %1520 = vmatpush1.msra.mxu0 0.0
        %1521 = vmatprep.subr.mxu0 0.0
        %1522 = vmatpush1.msra.mxu0 0.0
        %1523 = vmatprep.subr.mxu0 0.0
        %1524 = vmatpush1.msra.mxu0 0.0
        %1525 = vmatprep.subr.mxu0 0.0
        %1526 = vmatpush1.msra.mxu0 0.0
        %1527 = vmatprep.subr.mxu0 0.0
        %1528 = vmatpush1.msra.mxu0 0.0
        %1529 = vmatprep.subr.mxu0 0.0
        %1530 = vmatpush1.msra.mxu0 0.0
        %1531 = vmatprep.subr.mxu0 0.0
        %v1532 = vand.u32 %v816, 4294901760
        %v1533 = vsub.f32 %v816, %v1532
        %1534 = vmatpush1.msra.mxu0 %v1533
        %1535 = vmatprep.subr.mxu0 0.0
        %v1536 = vand.u32 %v810, 4294901760
        %v1537 = vsub.f32 %v810, %v1536
        %1538 = vmatpush1.msra.mxu0 %v1537
        %1539 = vmatprep.subr.mxu0 0.0
        %1540 = vmatpush2.msra.mxu0 0.0
        %1541 = vmatprep.subr.mxu0 0.0
        %1542 = vmatpush2.msra.mxu0 0.0
        %1543 = vmatprep.subr.mxu0 0.0
        %1544 = vmatpush2.msra.mxu0 0.0
        %1545 = vmatprep.subr.mxu0 0.0
        %1546 = vmatpush2.msra.mxu0 0.0
        %1547 = vmatprep.subr.mxu0 0.0
        %1548 = vmatpush2.msra.mxu0 0.0
        %1549 = vmatprep.subr.mxu0 0.0
        %1550 = vmatpush2.msra.mxu0 0.0
        %1551 = vmatprep.subr.mxu0 0.0
        %1552 = vmatpush2.msra.mxu0 0.0
        %1553 = vmatprep.subr.mxu0 0.0
        %1554 = vmatpush2.msra.mxu0 0.0
        %1555 = vmatprep.subr.mxu0 0.0
        %1556 = vmatpush2.msra.mxu0 0.0
        %1557 = vmatprep.subr.mxu0 0.0
        %1558 = vmatpush2.msra.mxu0 0.0
        %1559 = vmatprep.subr.mxu0 0.0
        %1560 = vmatpush2.msra.mxu0 0.0
        %1561 = vmatprep.subr.mxu0 0.0
        %1562 = vmatpush2.msra.mxu0 0.0
        %1563 = vmatprep.subr.mxu0 0.0
        %1564 = vmatpush2.msra.mxu0 0.0
        %1565 = vmatprep.subr.mxu0 0.0
        %1566 = vmatpush2.msra.mxu0 0.0
        %1567 = vmatprep.subr.mxu0 0.0
        %1568 = vmatpush2.msra.mxu0 0.0
        %1569 = vmatprep.subr.mxu0 0.0
        %1570 = vmatpush2.msra.mxu0 0.0
        %1571 = vmatprep.mubr.f32.mxu0 0.0
        %v1572 = vand.u32 %v822, 4294901760
        %v1573 = vsub.f32 %v822, %v1572
        %1574 = vmatmul.mubr.f32.gmra.mxu0 %v1573
        %v1575 = vpop.f32.mrf.mxu0
        %v1576 = vadd.f32 %v1494, %v1575
        %v1577 = vpop.f32.mrf.mxu0
        %1578 = vmatprep.mubr.f32.mxu0 0.0
        %v1579 = vand.u32 %v825, 4294901760
        %v1580 = vsub.f32 %v825, %v1579
        %1581 = vmatmul.mubr.f32.gmra.mxu0 %v1580
        %v1582 = vpop.f32.mrf.mxu0
        %v1583 = vadd.f32 %v1500, %v1582
        %v1584 = vpop.f32.mrf.mxu0
        %1585 = vdwg.mxu0
        %1586 = vmatprep.subr.mxu0 0.0
        %1587 = vmatpush1.msra.mxu0 0.0
        %1588 = vmatprep.subr.mxu0 0.0
        %1589 = vmatpush1.msra.mxu0 0.0
        %1590 = vmatprep.subr.mxu0 0.0
        %1591 = vmatpush1.msra.mxu0 0.0
        %1592 = vmatprep.subr.mxu0 0.0
        %1593 = vmatpush1.msra.mxu0 0.0
        %1594 = vmatprep.subr.mxu0 0.0
        %1595 = vmatpush1.msra.mxu0 0.0
        %1596 = vmatprep.subr.mxu0 0.0
        %1597 = vmatpush1.msra.mxu0 0.0
        %1598 = vmatprep.subr.mxu0 0.0
        %1599 = vmatpush1.msra.mxu0 0.0
        %1600 = vmatprep.subr.mxu0 0.0
        %1601 = vmatpush1.msra.mxu0 0.0
        %1602 = vmatprep.subr.mxu0 0.0
        %1603 = vmatpush1.msra.mxu0 0.0
        %1604 = vmatprep.subr.mxu0 0.0
        %1605 = vmatpush1.msra.mxu0 0.0
        %1606 = vmatprep.subr.mxu0 0.0
        %1607 = vmatpush1.msra.mxu0 0.0
        %1608 = vmatprep.subr.mxu0 0.0
        %1609 = vmatpush1.msra.mxu0 0.0
        %1610 = vmatprep.subr.mxu0 0.0
        %1611 = vmatpush1.msra.mxu0 0.0
        %1612 = vmatprep.subr.mxu0 0.0
        %1613 = vmatpush1.msra.mxu0 0.0
        %1614 = vmatprep.subr.mxu0 0.0
        %v1615 = vand.u32 %v816, 4294901760
        %1616 = vmatpush1.msra.mxu0 %v1615
        %1617 = vmatprep.subr.mxu0 0.0
        %v1618 = vand.u32 %v810, 4294901760
        %1619 = vmatpush1.msra.mxu0 %v1618
        %1620 = vmatprep.subr.mxu0 0.0
        %1621 = vmatpush2.msra.mxu0 0.0
        %1622 = vmatprep.subr.mxu0 0.0
        %1623 = vmatpush2.msra.mxu0 0.0
        %1624 = vmatprep.subr.mxu0 0.0
        %1625 = vmatpush2.msra.mxu0 0.0
        %1626 = vmatprep.subr.mxu0 0.0
        %1627 = vmatpush2.msra.mxu0 0.0
        %1628 = vmatprep.subr.mxu0 0.0
        %1629 = vmatpush2.msra.mxu0 0.0
        %1630 = vmatprep.subr.mxu0 0.0
        %1631 = vmatpush2.msra.mxu0 0.0
        %1632 = vmatprep.subr.mxu0 0.0
        %1633 = vmatpush2.msra.mxu0 0.0
        %1634 = vmatprep.subr.mxu0 0.0
        %1635 = vmatpush2.msra.mxu0 0.0
        %1636 = vmatprep.subr.mxu0 0.0
        %1637 = vmatpush2.msra.mxu0 0.0
        %1638 = vmatprep.subr.mxu0 0.0
        %1639 = vmatpush2.msra.mxu0 0.0
        %1640 = vmatprep.subr.mxu0 0.0
        %1641 = vmatpush2.msra.mxu0 0.0
        %1642 = vmatprep.subr.mxu0 0.0
        %1643 = vmatpush2.msra.mxu0 0.0
        %1644 = vmatprep.subr.mxu0 0.0
        %1645 = vmatpush2.msra.mxu0 0.0
        %1646 = vmatprep.subr.mxu0 0.0
        %1647 = vmatpush2.msra.mxu0 0.0
        %1648 = vmatprep.subr.mxu0 0.0
        %1649 = vmatpush2.msra.mxu0 0.0
        %1650 = vmatprep.subr.mxu0 0.0
        %1651 = vmatpush2.msra.mxu0 0.0
        %1652 = vmatprep.mubr.f32.mxu0 0.0
        %v1653 = vand.u32 %v822, 4294901760
        %v1654 = vsub.f32 %v822, %v1653
        %v1655 = vand.u32 %v1654, 4294901760
        %1656 = vmatmul.mubr.f32.gmra.mxu0 %v1655
        %v1657 = vpop.f32.mrf.mxu0
        %v1658 = vadd.f32 %v1576, %v1657
        %v1659 = vpop.f32.mrf.mxu0
        %1660 = vmatprep.mubr.f32.mxu0 0.0
        %v1661 = vand.u32 %v825, 4294901760
        %v1662 = vsub.f32 %v825, %v1661
        %v1663 = vand.u32 %v1662, 4294901760
        %1664 = vmatmul.mubr.f32.gmra.mxu0 %v1663
        %v1665 = vpop.f32.mrf.mxu0
        %v1666 = vadd.f32 %v1583, %v1665
        %v1667 = vpop.f32.mrf.mxu0
        %1668 = vdwg.mxu0
        %1669 = vmatprep.subr.mxu0 0.0
        %1670 = vmatpush1.msra.mxu0 0.0
        %1671 = vmatprep.subr.mxu0 0.0
        %1672 = vmatpush1.msra.mxu0 0.0
        %1673 = vmatprep.subr.mxu0 0.0
        %1674 = vmatpush1.msra.mxu0 0.0
        %1675 = vmatprep.subr.mxu0 0.0
        %1676 = vmatpush1.msra.mxu0 0.0
        %1677 = vmatprep.subr.mxu0 0.0
        %1678 = vmatpush1.msra.mxu0 0.0
        %1679 = vmatprep.subr.mxu0 0.0
        %1680 = vmatpush1.msra.mxu0 0.0
        %1681 = vmatprep.subr.mxu0 0.0
        %1682 = vmatpush1.msra.mxu0 0.0
        %1683 = vmatprep.subr.mxu0 0.0
        %1684 = vmatpush1.msra.mxu0 0.0
        %1685 = vmatprep.subr.mxu0 0.0
        %1686 = vmatpush1.msra.mxu0 0.0
        %1687 = vmatprep.subr.mxu0 0.0
        %1688 = vmatpush1.msra.mxu0 0.0
        %1689 = vmatprep.subr.mxu0 0.0
        %1690 = vmatpush1.msra.mxu0 0.0
        %1691 = vmatprep.subr.mxu0 0.0
        %1692 = vmatpush1.msra.mxu0 0.0
        %1693 = vmatprep.subr.mxu0 0.0
        %1694 = vmatpush1.msra.mxu0 0.0
        %1695 = vmatprep.subr.mxu0 0.0
        %1696 = vmatpush1.msra.mxu0 0.0
        %1697 = vmatprep.subr.mxu0 0.0
        %v1698 = vand.u32 %v816, 4294901760
        %v1699 = vsub.f32 %v816, %v1698
        %v1700 = vand.u32 %v1699, 4294901760
        %1701 = vmatpush1.msra.mxu0 %v1700
        %1702 = vmatprep.subr.mxu0 0.0
        %v1703 = vand.u32 %v810, 4294901760
        %v1704 = vsub.f32 %v810, %v1703
        %v1705 = vand.u32 %v1704, 4294901760
        %1706 = vmatpush1.msra.mxu0 %v1705
        %1707 = vmatprep.subr.mxu0 0.0
        %1708 = vmatpush2.msra.mxu0 0.0
        %1709 = vmatprep.subr.mxu0 0.0
        %1710 = vmatpush2.msra.mxu0 0.0
        %1711 = vmatprep.subr.mxu0 0.0
        %1712 = vmatpush2.msra.mxu0 0.0
        %1713 = vmatprep.subr.mxu0 0.0
        %1714 = vmatpush2.msra.mxu0 0.0
        %1715 = vmatprep.subr.mxu0 0.0
        %1716 = vmatpush2.msra.mxu0 0.0
        %1717 = vmatprep.subr.mxu0 0.0
        %1718 = vmatpush2.msra.mxu0 0.0
        %1719 = vmatprep.subr.mxu0 0.0
        %1720 = vmatpush2.msra.mxu0 0.0
        %1721 = vmatprep.subr.mxu0 0.0
        %1722 = vmatpush2.msra.mxu0 0.0
        %1723 = vmatprep.subr.mxu0 0.0
        %1724 = vmatpush2.msra.mxu0 0.0
        %1725 = vmatprep.subr.mxu0 0.0
        %1726 = vmatpush2.msra.mxu0 0.0
        %1727 = vmatprep.subr.mxu0 0.0
        %1728 = vmatpush2.msra.mxu0 0.0
        %1729 = vmatprep.subr.mxu0 0.0
        %1730 = vmatpush2.msra.mxu0 0.0
        %1731 = vmatprep.subr.mxu0 0.0
        %1732 = vmatpush2.msra.mxu0 0.0
        %1733 = vmatprep.subr.mxu0 0.0
        %1734 = vmatpush2.msra.mxu0 0.0
        %1735 = vmatprep.subr.mxu0 0.0
        %1736 = vmatpush2.msra.mxu0 0.0
        %1737 = vmatprep.subr.mxu0 0.0
        %1738 = vmatpush2.msra.mxu0 0.0
        %1739 = vmatprep.mubr.f32.mxu0 0.0
        %v1740 = vand.u32 %v822, 4294901760
        %1741 = vmatmul.mubr.f32.gmra.mxu0 %v1740
        %v1742 = vpop.f32.mrf.mxu0
        %v1743 = vadd.f32 %v1658, %v1742
        %v1744 = vpop.f32.mrf.mxu0
        %1745 = vmatprep.mubr.f32.mxu0 0.0
        %v1746 = vand.u32 %v825, 4294901760
        %1747 = vmatmul.mubr.f32.gmra.mxu0 %v1746
        %v1748 = vpop.f32.mrf.mxu0
        %v1749 = vadd.f32 %v1666, %v1748
        %v1750 = vpop.f32.mrf.mxu0
        %1751 = vdwg.mxu0
        %1752 = vmatprep.subr.mxu0 0.0
        %1753 = vmatpush1.msra.mxu0 0.0
        %1754 = vmatprep.subr.mxu0 0.0
        %1755 = vmatpush1.msra.mxu0 0.0
        %1756 = vmatprep.subr.mxu0 0.0
        %1757 = vmatpush1.msra.mxu0 0.0
        %1758 = vmatprep.subr.mxu0 0.0
        %1759 = vmatpush1.msra.mxu0 0.0
        %1760 = vmatprep.subr.mxu0 0.0
        %1761 = vmatpush1.msra.mxu0 0.0
        %1762 = vmatprep.subr.mxu0 0.0
        %1763 = vmatpush1.msra.mxu0 0.0
        %1764 = vmatprep.subr.mxu0 0.0
        %1765 = vmatpush1.msra.mxu0 0.0
        %1766 = vmatprep.subr.mxu0 0.0
        %1767 = vmatpush1.msra.mxu0 0.0
        %1768 = vmatprep.subr.mxu0 0.0
        %1769 = vmatpush1.msra.mxu0 0.0
        %1770 = vmatprep.subr.mxu0 0.0
        %1771 = vmatpush1.msra.mxu0 0.0
        %1772 = vmatprep.subr.mxu0 0.0
        %1773 = vmatpush1.msra.mxu0 0.0
        %1774 = vmatprep.subr.mxu0 0.0
        %1775 = vmatpush1.msra.mxu0 0.0
        %1776 = vmatprep.subr.mxu0 0.0
        %1777 = vmatpush1.msra.mxu0 0.0
        %1778 = vmatprep.subr.mxu0 0.0
        %1779 = vmatpush1.msra.mxu0 0.0
        %1780 = vmatprep.subr.mxu0 0.0
        %v1781 = vand.u32 %v816, 4294901760
        %1782 = vmatpush1.msra.mxu0 %v1781
        %1783 = vmatprep.subr.mxu0 0.0
        %v1784 = vand.u32 %v810, 4294901760
        %1785 = vmatpush1.msra.mxu0 %v1784
        %1786 = vmatprep.subr.mxu0 0.0
        %1787 = vmatpush2.msra.mxu0 0.0
        %1788 = vmatprep.subr.mxu0 0.0
        %1789 = vmatpush2.msra.mxu0 0.0
        %1790 = vmatprep.subr.mxu0 0.0
        %1791 = vmatpush2.msra.mxu0 0.0
        %1792 = vmatprep.subr.mxu0 0.0
        %1793 = vmatpush2.msra.mxu0 0.0
        %1794 = vmatprep.subr.mxu0 0.0
        %1795 = vmatpush2.msra.mxu0 0.0
        %1796 = vmatprep.subr.mxu0 0.0
        %1797 = vmatpush2.msra.mxu0 0.0
        %1798 = vmatprep.subr.mxu0 0.0
        %1799 = vmatpush2.msra.mxu0 0.0
        %1800 = vmatprep.subr.mxu0 0.0
        %1801 = vmatpush2.msra.mxu0 0.0
        %1802 = vmatprep.subr.mxu0 0.0
        %1803 = vmatpush2.msra.mxu0 0.0
        %1804 = vmatprep.subr.mxu0 0.0
        %1805 = vmatpush2.msra.mxu0 0.0
        %1806 = vmatprep.subr.mxu0 0.0
        %1807 = vmatpush2.msra.mxu0 0.0
        %1808 = vmatprep.subr.mxu0 0.0
        %1809 = vmatpush2.msra.mxu0 0.0
        %1810 = vmatprep.subr.mxu0 0.0
        %1811 = vmatpush2.msra.mxu0 0.0
        %1812 = vmatprep.subr.mxu0 0.0
        %1813 = vmatpush2.msra.mxu0 0.0
        %1814 = vmatprep.subr.mxu0 0.0
        %1815 = vmatpush2.msra.mxu0 0.0
        %1816 = vmatprep.subr.mxu0 0.0
        %1817 = vmatpush2.msra.mxu0 0.0
        %1818 = vmatprep.mubr.f32.mxu0 0.0
        %v1819 = vand.u32 %v822, 4294901760
        %1820 = vmatmul.mubr.f32.gmra.mxu0 %v1819
        %v1821 = vpop.f32.mrf.mxu0
        %v1822 = vadd.f32 %v1743, %v1821
        %v1823 = vpop.f32.mrf.mxu0
        %1824 = vmatprep.mubr.f32.mxu0 0.0
        %v1825 = vand.u32 %v825, 4294901760
        %1826 = vmatmul.mubr.f32.gmra.mxu0 %v1825
        %v1827 = vpop.f32.mrf.mxu0
        %v1828 = vadd.f32 %v1749, %v1827
        %v1829 = vpop.f32.mrf.mxu0
        %1830 = vdwg.mxu0
        %vm1831 = vcmask 523264
        %1832 = vst.msk [vmem:[%s196] sm:$0xff] %vm1831, %v1320
        %1833 = vst.msk [vmem:[%s196 + $0x8] sm:$0xff] %vm1831, %v1326
        %1834 = vst.msk [vmem:[%s196 + $0x10] sm:$0xff] %vm1831, %v1822
        %1835 = vst.msk [vmem:[%s196 + $0x18] sm:$0xff] %vm1831, %v1828
        %s1836 = sand.u32 %s112, 1
        %s1837 = scalar_lea.sflag [#allocation3], %s1836
        %s1838 = sand.u32 %s112, 1
        %s1839 = smul.addr %s1838, 32
        %s1840 = scalar_lea.vmem [#allocation2], %s1839
        // Predicated region
        $region33: #{tpu_custom_call.1} parent=31 // pred_check
          %p1841 = pneg %p122
        $region34: #{tpu_custom_call.1} parent=31 // pred_check_branch
          %1843 = sbr.rel (%p1841) target = $region36
        $region35: #{tpu_custom_call.1} parent=31 // pred_region
          #allocation5 [shape = 'u32[6]{0}', space=smem, size = 0x18, scoped, tag = 'DMA stride descriptor']
          %s1844 = smul.u32 2, %s21
          %s1845 = smul.u32 2, %s22
          %s1847 = ssub.s32 512, 512
          %1848 = vsyncadd %s1837, %s1847
          %s1849 = smul.addr %s1844, 8
          %s1850 = sadd.s32 %s1845, %s1849
          %s1851 = smul.addr %s1850, 128
          %s1852 = scalar_lea.hbm %s3, %s1851
          %s1854 = sshll.u32 1, 14
          %s1855 = sxor.u32 4294967295, %s1854
          %s1858 = sshll.u32 7, 18
          %s1859 = sxor.u32 4294967295, %s1858
          %s1860 = sand.u32 0, %s1859
          %s1862 = sor.u32 %s1860, 0
          %s1863 = sshll.u32 %s1840, 4
          %s1864 = int_to_ptr.vmem [resolvable:$true] %s1863
          %1870 = sst [smem:[#allocation5]] 256
          %s1871 = scalar_lea.smem [#allocation5], 1
          %1872 = sst [smem:[%s1871]] 1024
          %s1873 = scalar_lea.smem [#allocation5], 2
          %1874 = sst [smem:[%s1873]] 2
          %s1875 = scalar_lea.smem [#allocation5], 3
          %1876 = sst [smem:[%s1875]] 128
          %s1877 = scalar_lea.smem [#allocation5], 4
          %1878 = sst [smem:[%s1877]] 128
          %s1879 = scalar_lea.smem [#allocation5], 5
          %1880 = sst [smem:[%s1879]] 8
          %1882 = dma.general %s1864, 512, %s1852, %s1837, 131072, [#allocation5], %s1862, 0
        $region36: #{tpu_custom_call.1} parent=31 // pred_fallthru
          _
      $region32: #{tpu_custom_call.1} parent=5 // pred_fallthru
        _
      %p1883 = scmp.le.s32.totalorder 2, %s12
      // Predicated region
      $region37: #{tpu_custom_call.1} parent=5 // pred_check
        %p1884 = pneg %p1883
      $region38: #{tpu_custom_call.1} parent=5 // pred_check_branch
        %1886 = sbr.rel (%p1884) target = $region40
      $region39: #{tpu_custom_call.1} parent=5 // pred_region
        %s1887 = ssub.s32 %s12, 2
        // Predicated region
        $region41: #{tpu_custom_call.1} parent=39 // pred_check
          %p1888 = pneg %p128
        $region42: #{tpu_custom_call.1} parent=39 // pred_check_branch
          %1890 = sbr.rel (%p1888) target = $region44
        $region43: #{tpu_custom_call.1} parent=39 // pred_region
          %s1891 = sand.u32 %s113, 1
          %s1892 = scalar_lea.sflag [#allocation3], %s1891
          %s1893 = sand.u32 %s113, 1
          %s1894 = smul.addr %s1893, 32
          %s1895 = scalar_lea.vmem [#allocation2], %s1894
          %1896 = dma.done %s1892, 512
        $region44: #{tpu_custom_call.1} parent=39 // pred_fallthru
          _
      $region40: #{tpu_custom_call.1} parent=5 // pred_fallthru
        _
    $region6: #{tpu_custom_call.1} parent=1 // loop_footer
      %s16 = sadd.s32 1, %s12
    $region7: #{tpu_custom_call.1} parent=1 // loop_footer_branch
      %11 = sbr.rel target = $region3
    $region8: #{tpu_custom_call.1} parent=1 // loop_exit
      _
    %1897 = vsyncpa [#allocation3], 1
    %s1898 = scalar_lea.sflag [#allocation3], 1
    %1899 = vsyncpa %s1898, 1

</llo_original>
